<compile_context>
chip_gen: v6e
topology: v6e:2x2x1
jax: 0.10.0
libtpu: 0.0.40
codegen_flags: <defaults>
</compile_context>

<pallas_src>
import jax
import jax.numpy as jnp
from jax.experimental import pallas as pl
from jax.experimental.pallas import tpu as pltpu


def softpool_kernel(p_ref, x_ref, o_ref):
    # p_ref: (1, HW)   x_ref: (TR, HW)   o_ref: (TR, H)
    HW = x_ref.shape[-1]
    H = o_ref.shape[-1]
    W = HW // H
    TR = x_ref.shape[0]

    x = x_ref[...].astype(jnp.float32)       # upcast (bf16 inputs supported)
    p = p_ref[...].astype(jnp.float32)       # (1, HW), broadcast over rows

    z = p * x
    # Numerically stable softmax over the joint (H, W) axes == the HW lanes.
    m = jnp.max(z, axis=-1, keepdims=True)           # (TR, 1)   XLU reduce
    e = jnp.exp(z - m)                                # EUP
    denom = jnp.sum(e, axis=-1, keepdims=True)        # (TR, 1)

    t = x * e                                          # un-normalised x*weights

    # Segmented sum over W for each H column (exact f32, pure VPU/XLU; no
    # relayout-heavy reshape, no bf16 MXU passes).
    lane = jax.lax.broadcasted_iota(jnp.int32, (1, HW), 1)    # (1, HW)
    col_idx = jax.lax.broadcasted_iota(jnp.int32, (1, H), 1)  # (1, H)
    num = jnp.zeros((TR, H), jnp.float32)
    for h in range(H):                                 # static, unrolls (H=4)
        in_seg = (lane >= h * W) & (lane < (h + 1) * W)               # (1, HW)
        col = jnp.sum(jnp.where(in_seg, t, 0.0), axis=-1, keepdims=True)  # (TR,1)
        num = num + jnp.where(col_idx == h, col, 0.0)                 # (TR, H)

    # Factored denominator: one reciprocal per row instead of an HW-wide divide.
    # approx=False to hold the 1e-5 test tolerance; approx=True is fine in prod.
    inv = pl.reciprocal(denom, approx=False)           # (TR, 1)
    o_ref[...] = (num * inv).astype(o_ref.dtype)


def _softpool_rows(x2d, p2d, H, *, target_block_bytes=1 << 20):
    """x2d: (rows, HW) = (B*C, H*W), p2d: (1, HW) -> (rows, H)."""
    rows, HW = x2d.shape
    itemsize = jnp.dtype(x2d.dtype).itemsize
    bytes_per_row = HW * itemsize

    # Row tile: ~target_block_bytes of input per step, capped so the grid has
    # >= 2 steps (v7x megacore + pipelining), floored to a multiple of 8
    # sublanes.  With a pl.cdiv grid the ragged last block computes softmax on
    # garbage rows, but those rows are dropped on the bounded output write and
    # never feed a cross-row reduction, so this is safe.
    row_tile = max(1, target_block_bytes // bytes_per_row)
    row_tile = min(row_tile, max(1, pl.cdiv(rows, 2)))
    row_tile = max(8, (row_tile // 8) * 8)
    row_tile = int(min(row_tile, rows))
    grid = (pl.cdiv(rows, row_tile),)

    cost = pl.CostEstimate(
        flops=7 * rows * HW,
        transcendentals=rows * HW,
        bytes_accessed=(rows * HW + rows * H) * itemsize + HW * 4,
    )

    return pl.pallas_call(
        softpool_kernel,
        out_shape=jax.ShapeDtypeStruct((rows, H), x2d.dtype),
        grid_spec=pltpu.PrefetchScalarGridSpec(
            num_scalar_prefetch=0,
            grid=grid,
            in_specs=[
                pl.BlockSpec((1, HW), lambda i: (0, 0)),         # p (shared, dense)
                pl.BlockSpec((row_tile, HW), lambda i: (i, 0)),  # x row slab
            ],
            out_specs=pl.BlockSpec((row_tile, H), lambda i: (i, 0)),
        ),
        compiler_params=pltpu.CompilerParams(
            dimension_semantics=("parallel",),   # shard row-slabs across TCs
            vmem_limit_bytes=48 * 1024 * 1024,   # headroom incl. v7x's 64 MiB
        ),
        cost_estimate=cost,
    )(p2d, x2d)


def softpool(x, p, *, target_block_bytes=1 << 20):
    """NCHW interface matching the PyTorch module.

    x: (B, C, H, W), p: (1, 1, H, W)  ->  (B, C, H, 1)
    """
    B, C, H, W = x.shape
    assert p.shape == (1, 1, H, W)
    x2d = x.reshape(B * C, H * W)     # free view of the contiguous NCHW tensor
    p2d = p.reshape(1, H * W)
    out2d = _softpool_rows(x2d, p2d, H, target_block_bytes=target_block_bytes)
    return out2d.reshape(B, C, H, 1)  # free reshape back


def softpool_reference(x, p):
    B, C, H, W = x.shape
    z = (p * x).reshape(B, C, H * W)
    w = jax.nn.softmax(z, axis=-1).reshape(B, C, H, W)
    return jnp.sum(x * w, axis=-1, keepdims=True)


if __name__ == "__main__":
    key = jax.random.PRNGKey(0)
    kx, kp = jax.random.split(key)

    # size=(4, 12) from the module's __init__; C a ConvNeXt-like multiple of
    # 128 so row count (B*C) is realistic while shapes stay small.
    B, C, H, W = 4, 256, 4, 12
    x = jax.random.normal(kx, (B, C, H, W), dtype=jnp.float32)
    # Deterministic parameter init (the module's __init__ only fixes the shape).
    p = jax.random.normal(kp, (1, 1, H, W), dtype=jnp.float32) * 0.1

    out = jax.block_until_ready(softpool(x, p))

    ref = softpool_reference(x, p)
    assert out.shape == (B, C, H, 1), out.shape
    assert jnp.allclose(out, ref, atol=1e-5, rtol=1e-5), (
        f"max abs err {jnp.max(jnp.abs(out - ref))}"
    )
    print("KERNEL_OK")
</pallas_src>

<mosaic_0001>
module attributes {stable_mosaic.version = 11 : i64} {
  func.func @softpool_kernel(%arg0: i32, %arg1: memref<1x48xf32, #tpu.memory_space<vmem>>, %arg2: memref<512x48xf32, #tpu.memory_space<vmem>>, %arg3: memref<512x4xf32, #tpu.memory_space<vmem>>) attributes {dimension_semantics = [#tpu.dimension_semantics<parallel>], iteration_bounds = array<i64: 2>, scalar_prefetch = 0 : i64, scratch_operands = 0 : i64, tpu.core_type = #tpu.core_type<tc>, window_params = [{pipeline_mode = #tpu.pipeline_mode<synchronous>, transform_indices = @transform_0, window_bounds = array<i64: 1, 48>}, {transform_indices = @transform_1, window_bounds = array<i64: 512, 48>}, {transform_indices = @transform_2, window_bounds = array<i64: 512, 4>}]} {
    %c0 = arith.constant 0 : index
    %c0_0 = arith.constant 0 : index
    %0 = vector.load %arg2[%c0, %c0_0] : memref<512x48xf32, #tpu.memory_space<vmem>>, vector<512x48xf32>
    %c0_1 = arith.constant 0 : index
    %c0_2 = arith.constant 0 : index
    %1 = vector.load %arg1[%c0_1, %c0_2] : memref<1x48xf32, #tpu.memory_space<vmem>>, vector<1x48xf32>
    %2 = vector.broadcast %1 : vector<1x48xf32> to vector<512x48xf32>
    %3 = arith.mulf %2, %0 : vector<512x48xf32>
    %cst = arith.constant dense<0xFF800000> : vector<512xf32>
    %4 = vector.multi_reduction <maximumf>, %3, %cst [1] : vector<512x48xf32> to vector<512xf32>
    %5 = vector.shape_cast %4 : vector<512xf32> to vector<512x1xf32>
    %6 = vector.broadcast %5 : vector<512x1xf32> to vector<512x48xf32>
    %7 = arith.subf %3, %6 : vector<512x48xf32>
    %8 = math.exp %7 : vector<512x48xf32>
    %cst_3 = arith.constant dense<0.000000e+00> : vector<512xf32>
    %9 = vector.multi_reduction <add>, %8, %cst_3 [1] : vector<512x48xf32> to vector<512xf32>
    %10 = vector.shape_cast %9 : vector<512xf32> to vector<512x1xf32>
    %11 = arith.mulf %0, %8 : vector<512x48xf32>
    %12 = tpu.iota {dimensions = array<i32: 1>} : vector<1x48xi32>
    %13 = tpu.iota {dimensions = array<i32: 1>} : vector<1x4xi32>
    %cst_4 = arith.constant 0.000000e+00 : f32
    %14 = vector.broadcast %cst_4 : f32 to vector<512x4xf32>
    %c0_i32 = arith.constant 0 : i32
    %15 = vector.broadcast %c0_i32 : i32 to vector<1x48xi32>
    %16 = arith.cmpi sge, %12, %15 : vector<1x48xi32>
    %c12_i32 = arith.constant 12 : i32
    %17 = vector.broadcast %c12_i32 : i32 to vector<1x48xi32>
    %18 = arith.cmpi slt, %12, %17 : vector<1x48xi32>
    %19 = arith.andi %16, %18 : vector<1x48xi1>
    %cst_5 = arith.constant 0.000000e+00 : f32
    %20 = vector.shape_cast %19 : vector<1x48xi1> to vector<1x48xi1>
    %21 = vector.broadcast %20 : vector<1x48xi1> to vector<512x48xi1>
    %22 = vector.broadcast %cst_5 : f32 to vector<512x48xf32>
    %23 = arith.select %21, %11, %22 : vector<512x48xi1>, vector<512x48xf32>
    %cst_6 = arith.constant dense<0.000000e+00> : vector<512xf32>
    %24 = vector.multi_reduction <add>, %23, %cst_6 [1] : vector<512x48xf32> to vector<512xf32>
    %25 = vector.shape_cast %24 : vector<512xf32> to vector<512x1xf32>
    %c0_i32_7 = arith.constant 0 : i32
    %26 = vector.broadcast %c0_i32_7 : i32 to vector<1x4xi32>
    %27 = arith.cmpi eq, %13, %26 : vector<1x4xi32>
    %cst_8 = arith.constant 0.000000e+00 : f32
    %28 = vector.shape_cast %27 : vector<1x4xi1> to vector<1x4xi1>
    %29 = vector.broadcast %28 : vector<1x4xi1> to vector<512x4xi1>
    %30 = vector.shape_cast %25 : vector<512x1xf32> to vector<512x1xf32>
    %31 = vector.broadcast %30 : vector<512x1xf32> to vector<512x4xf32>
    %32 = vector.broadcast %cst_8 : f32 to vector<512x4xf32>
    %33 = arith.select %29, %31, %32 : vector<512x4xi1>, vector<512x4xf32>
    %34 = arith.addf %14, %33 : vector<512x4xf32>
    %c12_i32_9 = arith.constant 12 : i32
    %35 = vector.broadcast %c12_i32_9 : i32 to vector<1x48xi32>
    %36 = arith.cmpi sge, %12, %35 : vector<1x48xi32>
    %c24_i32 = arith.constant 24 : i32
    %37 = vector.broadcast %c24_i32 : i32 to vector<1x48xi32>
    %38 = arith.cmpi slt, %12, %37 : vector<1x48xi32>
    %39 = arith.andi %36, %38 : vector<1x48xi1>
    %cst_10 = arith.constant 0.000000e+00 : f32
    %40 = vector.shape_cast %39 : vector<1x48xi1> to vector<1x48xi1>
    %41 = vector.broadcast %40 : vector<1x48xi1> to vector<512x48xi1>
    %42 = vector.broadcast %cst_10 : f32 to vector<512x48xf32>
    %43 = arith.select %41, %11, %42 : vector<512x48xi1>, vector<512x48xf32>
    %cst_11 = arith.constant dense<0.000000e+00> : vector<512xf32>
    %44 = vector.multi_reduction <add>, %43, %cst_11 [1] : vector<512x48xf32> to vector<512xf32>
    %45 = vector.shape_cast %44 : vector<512xf32> to vector<512x1xf32>
    %c1_i32 = arith.constant 1 : i32
    %46 = vector.broadcast %c1_i32 : i32 to vector<1x4xi32>
    %47 = arith.cmpi eq, %13, %46 : vector<1x4xi32>
    %cst_12 = arith.constant 0.000000e+00 : f32
    %48 = vector.shape_cast %47 : vector<1x4xi1> to vector<1x4xi1>
    %49 = vector.broadcast %48 : vector<1x4xi1> to vector<512x4xi1>
    %50 = vector.shape_cast %45 : vector<512x1xf32> to vector<512x1xf32>
    %51 = vector.broadcast %50 : vector<512x1xf32> to vector<512x4xf32>
    %52 = vector.broadcast %cst_12 : f32 to vector<512x4xf32>
    %53 = arith.select %49, %51, %52 : vector<512x4xi1>, vector<512x4xf32>
    %54 = arith.addf %34, %53 : vector<512x4xf32>
    %c24_i32_13 = arith.constant 24 : i32
    %55 = vector.broadcast %c24_i32_13 : i32 to vector<1x48xi32>
    %56 = arith.cmpi sge, %12, %55 : vector<1x48xi32>
    %c36_i32 = arith.constant 36 : i32
    %57 = vector.broadcast %c36_i32 : i32 to vector<1x48xi32>
    %58 = arith.cmpi slt, %12, %57 : vector<1x48xi32>
    %59 = arith.andi %56, %58 : vector<1x48xi1>
    %cst_14 = arith.constant 0.000000e+00 : f32
    %60 = vector.shape_cast %59 : vector<1x48xi1> to vector<1x48xi1>
    %61 = vector.broadcast %60 : vector<1x48xi1> to vector<512x48xi1>
    %62 = vector.broadcast %cst_14 : f32 to vector<512x48xf32>
    %63 = arith.select %61, %11, %62 : vector<512x48xi1>, vector<512x48xf32>
    %cst_15 = arith.constant dense<0.000000e+00> : vector<512xf32>
    %64 = vector.multi_reduction <add>, %63, %cst_15 [1] : vector<512x48xf32> to vector<512xf32>
    %65 = vector.shape_cast %64 : vector<512xf32> to vector<512x1xf32>
    %c2_i32 = arith.constant 2 : i32
    %66 = vector.broadcast %c2_i32 : i32 to vector<1x4xi32>
    %67 = arith.cmpi eq, %13, %66 : vector<1x4xi32>
    %cst_16 = arith.constant 0.000000e+00 : f32
    %68 = vector.shape_cast %67 : vector<1x4xi1> to vector<1x4xi1>
    %69 = vector.broadcast %68 : vector<1x4xi1> to vector<512x4xi1>
    %70 = vector.shape_cast %65 : vector<512x1xf32> to vector<512x1xf32>
    %71 = vector.broadcast %70 : vector<512x1xf32> to vector<512x4xf32>
    %72 = vector.broadcast %cst_16 : f32 to vector<512x4xf32>
    %73 = arith.select %69, %71, %72 : vector<512x4xi1>, vector<512x4xf32>
    %74 = arith.addf %54, %73 : vector<512x4xf32>
    %c36_i32_17 = arith.constant 36 : i32
    %75 = vector.broadcast %c36_i32_17 : i32 to vector<1x48xi32>
    %76 = arith.cmpi sge, %12, %75 : vector<1x48xi32>
    %c48_i32 = arith.constant 48 : i32
    %77 = vector.broadcast %c48_i32 : i32 to vector<1x48xi32>
    %78 = arith.cmpi slt, %12, %77 : vector<1x48xi32>
    %79 = arith.andi %76, %78 : vector<1x48xi1>
    %cst_18 = arith.constant 0.000000e+00 : f32
    %80 = vector.shape_cast %79 : vector<1x48xi1> to vector<1x48xi1>
    %81 = vector.broadcast %80 : vector<1x48xi1> to vector<512x48xi1>
    %82 = vector.broadcast %cst_18 : f32 to vector<512x48xf32>
    %83 = arith.select %81, %11, %82 : vector<512x48xi1>, vector<512x48xf32>
    %cst_19 = arith.constant dense<0.000000e+00> : vector<512xf32>
    %84 = vector.multi_reduction <add>, %83, %cst_19 [1] : vector<512x48xf32> to vector<512xf32>
    %85 = vector.shape_cast %84 : vector<512xf32> to vector<512x1xf32>
    %c3_i32 = arith.constant 3 : i32
    %86 = vector.broadcast %c3_i32 : i32 to vector<1x4xi32>
    %87 = arith.cmpi eq, %13, %86 : vector<1x4xi32>
    %cst_20 = arith.constant 0.000000e+00 : f32
    %88 = vector.shape_cast %87 : vector<1x4xi1> to vector<1x4xi1>
    %89 = vector.broadcast %88 : vector<1x4xi1> to vector<512x4xi1>
    %90 = vector.shape_cast %85 : vector<512x1xf32> to vector<512x1xf32>
    %91 = vector.broadcast %90 : vector<512x1xf32> to vector<512x4xf32>
    %92 = vector.broadcast %cst_20 : f32 to vector<512x4xf32>
    %93 = arith.select %89, %91, %92 : vector<512x4xi1>, vector<512x4xf32>
    %94 = arith.addf %74, %93 : vector<512x4xf32>
    %95 = tpu.reciprocal %10 : vector<512x1xf32> -> vector<512x1xf32>
    %96 = vector.broadcast %95 : vector<512x1xf32> to vector<512x4xf32>
    %97 = arith.mulf %94, %96 : vector<512x4xf32>
    %c0_21 = arith.constant 0 : index
    %c0_22 = arith.constant 0 : index
    %98 = vector.load %arg3[%c0_21, %c0_22] : memref<512x4xf32, #tpu.memory_space<vmem>>, vector<512x4xf32>
    tpu.vector_store %arg3[%c0_21, %c0_22], %97 {strides = array<i32>} : memref<512x4xf32, #tpu.memory_space<vmem>>, vector<512x4xf32>,
    return
  }
  func.func @transform_0(%arg0: i32) -> (i32, i32) {
    %c0_i32 = arith.constant 0 : i32
    %c0_i32_0 = arith.constant 0 : i32
    %c0_i32_1 = arith.constant 0 : i32
    return %c0_i32, %c0_i32_0 : i32, i32
  }
  func.func @transform_1(%arg0: i32) -> (i32, i32) {
    %c0_i32 = arith.constant 0 : i32
    %c0_i32_0 = arith.constant 0 : i32
    return %arg0, %c0_i32 : i32, i32
  }
  func.func @transform_2(%arg0: i32) -> (i32, i32) {
    %c0_i32 = arith.constant 0 : i32
    %c0_i32_0 = arith.constant 0 : i32
    return %arg0, %c0_i32 : i32, i32
  }
}

</mosaic_0001>

<llo_original>
// kernel: tpu_custom_call.1
$region0: #{tpu_custom_call.1}
  #allocation0 [shape = 'u32[]', space=smem, size = 0x4, offset = 0x4, fixed_abs, tag = 'smem constant byte address 0x4 - core index']
  #allocation1 [shape = 'u32[144,128]{1,0:T(1,128)}', space=vmem, size = 0x12000, scoped, tag = 'internal scratch']
  %s0 = inlined_call_operand.vmem [shape: f32[1,48], index: 0, kind: input, shape index: {}]
  %s1 = inlined_call_operand.vmem [shape: f32[1024,48], index: 1, kind: input, shape index: {}]
  %s2 = inlined_call_operand.vmem [shape: f32[1024,4], index: 2, kind: output, shape index: {}]
  %s3 = sld [smem:[#allocation0]]
  $region41: #{tpu_custom_call.1} parent=0
    _
  %s5 = ssub.s32 1, %s3
  %s6 = scalar_select 0, %s5, %s3
  loop: start=0, step=1, limit=4
  $region2: #{tpu_custom_call.1} parent=0 // loop_pre_header
    _
  $region3: #{tpu_custom_call.1} parent=0 // loop_header
    %s8 = sphi 0, %s12
    %p9 = scmp.ge.s32.totalorder %s8, 4
    %s16 = sphi 0, %s16
    %s18 = sphi 0, %s16
    %s19 = sphi 0, %s18
    %s33 = sphi 0, %s19
    %s39 = sphi 0, %s41
    %s42 = sphi 0, %s39
    %s43 = sphi 0, %s42
    %s59 = sphi 0, %s43
    %s65 = sphi 0, %s67
    %s68 = sphi 0, %s65
    %s69 = sphi 0, %s68
    %s85 = sphi 0, %s69
  $region4: #{tpu_custom_call.1} parent=0 // loop_header_branch
    %11 = sbr.rel (%p9) target = $region8
  $region5: #{tpu_custom_call.1} parent=0 // loop_body
    %s13 = ssub.s32 %s8, 1
    %s14 = ssub.s32 %s8, 2
    %s15 = sadd.s32 %s8, 1
    %s17 = sadd.s32 %s16, 1
    %p20 = scmp.eq.s32.totalorder %s8, 1
    %p21 = scmp.ne.s32.totalorder %s16, %s18
    %p22 = scmp.eq.s32.totalorder %s8, 0
    %p23 = por %p21, %p22
    %p24 = scmp.ne.s32.totalorder %s16, %s18
    %p25 = scmp.eq.s32.totalorder %s13, 1
    %p26 = por %p24, %p25
    %p27 = scmp.ne.s32.totalorder %s18, %s19
    %p28 = scmp.eq.s32.totalorder %s13, 0
    %p29 = por %p27, %p28
    %p30 = scmp.ne.s32.totalorder %s18, %s19
    %p31 = scmp.eq.s32.totalorder %s14, 1
    %p32 = por %p30, %p31
    %p34 = scmp.ne.s32.totalorder %s19, %s33
    %p35 = scmp.eq.s32.totalorder %s14, 0
    %p36 = por %p34, %p35
    %s37 = ssub.s32 %s8, %s15
    %p38 = scmp.eq.s32.totalorder %s37, 0
    %s40 = sadd.s32 %s39, 1
    %s41 = scalar_select %p38, %s39, %s40
    %p44 = pneg %p38
    %p45 = scmp.eq.s32.totalorder %s8, 1
    %p46 = por %p44, %p45
    %p47 = scmp.ne.s32.totalorder %s39, %s42
    %p48 = scmp.eq.s32.totalorder %s8, 0
    %p49 = por %p47, %p48
    %p50 = scmp.ne.s32.totalorder %s39, %s42
    %p51 = scmp.eq.s32.totalorder %s13, 1
    %p52 = por %p50, %p51
    %p53 = scmp.ne.s32.totalorder %s42, %s43
    %p54 = scmp.eq.s32.totalorder %s13, 0
    %p55 = por %p53, %p54
    %p56 = scmp.ne.s32.totalorder %s42, %s43
    %p57 = scmp.eq.s32.totalorder %s14, 1
    %p58 = por %p56, %p57
    %p60 = scmp.ne.s32.totalorder %s43, %s59
    %p61 = scmp.eq.s32.totalorder %s14, 0
    %p62 = por %p60, %p61
    %s63 = ssub.s32 %s8, %s15
    %p64 = scmp.eq.s32.totalorder %s63, 0
    %s66 = sadd.s32 %s65, 1
    %s67 = scalar_select %p64, %s65, %s66
    %p70 = pneg %p64
    %p71 = scmp.eq.s32.totalorder %s8, 1
    %p72 = por %p70, %p71
    %p73 = scmp.ne.s32.totalorder %s65, %s68
    %p74 = scmp.eq.s32.totalorder %s8, 0
    %p75 = por %p73, %p74
    %p76 = scmp.ne.s32.totalorder %s65, %s68
    %p77 = scmp.eq.s32.totalorder %s13, 1
    %p78 = por %p76, %p77
    %p79 = scmp.ne.s32.totalorder %s68, %s69
    %p80 = scmp.eq.s32.totalorder %s13, 0
    %p81 = por %p79, %p80
    %p82 = scmp.ne.s32.totalorder %s68, %s69
    %p83 = scmp.eq.s32.totalorder %s14, 1
    %p84 = por %p82, %p83
    %p86 = scmp.ne.s32.totalorder %s69, %s85
    %p87 = scmp.eq.s32.totalorder %s14, 0
    %p88 = por %p86, %p87
    %p89 = scmp.le.s32.totalorder 1, %s8
    %p90 = scmp.lt.s32.totalorder %s8, 3
    %p91 = pnand %p89, %p90
    %p92 = pneg %p91
    // Predicated region
    $region9: #{tpu_custom_call.1} parent=5 // pred_check
      _
    $region10: #{tpu_custom_call.1} parent=5 // pred_check_branch
      %94 = sbr.rel (%p91) target = $region12
    $region11: #{tpu_custom_call.1} parent=5 // pred_region
      %s95 = ssub.s32 %s8, 1
      // Predicated region
      $region13: #{tpu_custom_call.1} parent=11 // pred_check
        %p96 = pneg %p29
      $region14: #{tpu_custom_call.1} parent=11 // pred_check_branch
        %98 = sbr.rel (%p96) target = $region16
      $region15: #{tpu_custom_call.1} parent=11 // pred_region
        _
      $region16: #{tpu_custom_call.1} parent=11 // pred_fallthru
        _
    $region12: #{tpu_custom_call.1} parent=5 // pred_fallthru
      _
    %p99 = scmp.lt.s32.totalorder %s8, 2
    // Predicated region
    $region17: #{tpu_custom_call.1} parent=5 // pred_check
      %p100 = pneg %p99
    $region18: #{tpu_custom_call.1} parent=5 // pred_check_branch
      %102 = sbr.rel (%p100) target = $region20
    $region19: #{tpu_custom_call.1} parent=5 // pred_region
      // Predicated region
      $region21: #{tpu_custom_call.1} parent=19 // pred_check
        %p103 = pneg %p49
      $region22: #{tpu_custom_call.1} parent=19 // pred_check_branch
        %105 = sbr.rel (%p103) target = $region24
      $region23: #{tpu_custom_call.1} parent=19 // pred_region
        %s106 = smul.u32 64, %s8
        %p107 = scmp.lt.s32.totalorder %s106, 127
        %s108 = scalar_select %p107, %s106, 127
        %s109 = smul.addr %s108, 8
        %s110 = scalar_lea.vmem %s1, %s109
        %s111 = smul.u32 64, %s8
      $region24: #{tpu_custom_call.1} parent=19 // pred_fallthru
        _
    $region20: #{tpu_custom_call.1} parent=5 // pred_fallthru
      _
    %p112 = scmp.le.s32.totalorder 1, %s8
    %p113 = scmp.lt.s32.totalorder %s8, 3
    %p114 = pnand %p112, %p113
    %p115 = pneg %p114
    // Predicated region
    $region25: #{tpu_custom_call.1} parent=5 // pred_check
      _
    $region26: #{tpu_custom_call.1} parent=5 // pred_check_branch
      %117 = sbr.rel (%p114) target = $region28
    $region27: #{tpu_custom_call.1} parent=5 // pred_region
      %s118 = ssub.s32 %s8, 1
      %p119 = pneg %p29
      %p120 = pneg %p26
      %s121 = smul.u32 64, %s13
      %p122 = scmp.lt.s32.totalorder %s121, 127
      %s123 = scalar_select %p122, %s121, 127
      %s124 = smul.addr %s123, 8
      %s125 = scalar_lea.vmem %s1, %s124
      %p126 = pneg %p55
      %p127 = pneg %p52
      %p128 = pneg %p81
      %p129 = pneg %p78
      %s130 = smul.u32 64, %s13
      %p131 = scmp.lt.s32.totalorder %s130, 127
      %s132 = scalar_select %p131, %s130, 127
      %s133 = smul.addr %s132, 8
      %s134 = scalar_lea.vmem %s2, %s133
      %s135 = smul.u32 64, %s13
      %p136 = scmp.lt.s32.totalorder %s135, 127
      %s137 = scalar_select %p136, %s135, 127
      %s138 = smul.addr %s137, 8
      %s139 = scalar_lea.vmem %s1, %s138
      %s140 = smul.u32 64, %s13
      %s141 = smul.u32 64, %s13
      %p142 = scmp.lt.s32.totalorder %s141, 127
      %s143 = scalar_select %p142, %s141, 127
      %s144 = smul.addr %s143, 8
      %s145 = scalar_lea.vmem %s2, %s144
      %s146 = smul.u32 64, %s13
      %v147 = vld [vmem:[%s139] sm:$0xff]
      %v148 = vld [vmem:[%s139 + $0x8] sm:$0xff]
      %v149 = vld [vmem:[%s139 + $0x10] sm:$0xff]
      %v150 = vld [vmem:[%s139 + $0x18] sm:$0xff]
      %v151 = vld [vmem:[%s139 + $0x20] sm:$0xff]
      %v152 = vld [vmem:[%s139 + $0x28] sm:$0xff]
      %v153 = vld [vmem:[%s139 + $0x30] sm:$0xff]
      %v154 = vld [vmem:[%s139 + $0x38] sm:$0xff]
      %v155 = vld [vmem:[%s139 + $0x40] sm:$0xff]
      %v156 = vld [vmem:[%s139 + $0x48] sm:$0xff]
      %v157 = vld [vmem:[%s139 + $0x50] sm:$0xff]
      %v158 = vld [vmem:[%s139 + $0x58] sm:$0xff]
      %v159 = vld [vmem:[%s139 + $0x60] sm:$0xff]
      %v160 = vld [vmem:[%s139 + $0x68] sm:$0xff]
      %v161 = vld [vmem:[%s139 + $0x70] sm:$0xff]
      %v162 = vld [vmem:[%s139 + $0x78] sm:$0xff]
      %v163 = vld [vmem:[%s139 + $0x80] sm:$0xff]
      %v164 = vld [vmem:[%s139 + $0x88] sm:$0xff]
      %v165 = vld [vmem:[%s139 + $0x90] sm:$0xff]
      %v166 = vld [vmem:[%s139 + $0x98] sm:$0xff]
      %v167 = vld [vmem:[%s139 + $0xa0] sm:$0xff]
      %v168 = vld [vmem:[%s139 + $0xa8] sm:$0xff]
      %v169 = vld [vmem:[%s139 + $0xb0] sm:$0xff]
      %v170 = vld [vmem:[%s139 + $0xb8] sm:$0xff]
      %v171 = vld [vmem:[%s139 + $0xc0] sm:$0xff]
      %v172 = vld [vmem:[%s139 + $0xc8] sm:$0xff]
      %v173 = vld [vmem:[%s139 + $0xd0] sm:$0xff]
      %v174 = vld [vmem:[%s139 + $0xd8] sm:$0xff]
      %v175 = vld [vmem:[%s139 + $0xe0] sm:$0xff]
      %v176 = vld [vmem:[%s139 + $0xe8] sm:$0xff]
      %v177 = vld [vmem:[%s139 + $0xf0] sm:$0xff]
      %v178 = vld [vmem:[%s139 + $0xf8] sm:$0xff]
      %v179 = vld [vmem:[%s139 + $0x100] sm:$0xff]
      %v180 = vld [vmem:[%s139 + $0x108] sm:$0xff]
      %v181 = vld [vmem:[%s139 + $0x110] sm:$0xff]
      %v182 = vld [vmem:[%s139 + $0x118] sm:$0xff]
      %v183 = vld [vmem:[%s139 + $0x120] sm:$0xff]
      %v184 = vld [vmem:[%s139 + $0x128] sm:$0xff]
      %v185 = vld [vmem:[%s139 + $0x130] sm:$0xff]
      %v186 = vld [vmem:[%s139 + $0x138] sm:$0xff]
      %v187 = vld [vmem:[%s139 + $0x140] sm:$0xff]
      %v188 = vld [vmem:[%s139 + $0x148] sm:$0xff]
      %v189 = vld [vmem:[%s139 + $0x150] sm:$0xff]
      %v190 = vld [vmem:[%s139 + $0x158] sm:$0xff]
      %v191 = vld [vmem:[%s139 + $0x160] sm:$0xff]
      %v192 = vld [vmem:[%s139 + $0x168] sm:$0xff]
      %v193 = vld [vmem:[%s139 + $0x170] sm:$0xff]
      %v194 = vld [vmem:[%s139 + $0x178] sm:$0xff]
      %v195 = vld [vmem:[%s139 + $0x180] sm:$0xff]
      %v196 = vld [vmem:[%s139 + $0x188] sm:$0xff]
      %v197 = vld [vmem:[%s139 + $0x190] sm:$0xff]
      %v198 = vld [vmem:[%s139 + $0x198] sm:$0xff]
      %v199 = vld [vmem:[%s139 + $0x1a0] sm:$0xff]
      %v200 = vld [vmem:[%s139 + $0x1a8] sm:$0xff]
      %v201 = vld [vmem:[%s139 + $0x1b0] sm:$0xff]
      %v202 = vld [vmem:[%s139 + $0x1b8] sm:$0xff]
      %v203 = vld [vmem:[%s139 + $0x1c0] sm:$0xff]
      %v204 = vld [vmem:[%s139 + $0x1c8] sm:$0xff]
      %v205 = vld [vmem:[%s139 + $0x1d0] sm:$0xff]
      %v206 = vld [vmem:[%s139 + $0x1d8] sm:$0xff]
      %v207 = vld [vmem:[%s139 + $0x1e0] sm:$0xff]
      %v208 = vld [vmem:[%s139 + $0x1e8] sm:$0xff]
      %v209 = vld [vmem:[%s139 + $0x1f0] sm:$0xff]
      %v210 = vld [vmem:[%s139 + $0x1f8] sm:$0xff]
      %v211 = vld [vmem:[%s0] sm:$0x1]
      %v213 = vlaneseq
      %v214 = vshrl.u32 %v213, 7
      %v215 = vsub.s32 0, %v214
      %v216 = vrot.slane %v211, %v215
      %v218 = vmul.f32 %v216, %v147
      %v219 = vmul.f32 %v216, %v148
      %v220 = vmul.f32 %v216, %v149
      %v221 = vmul.f32 %v216, %v150
      %v222 = vmul.f32 %v216, %v151
      %v223 = vmul.f32 %v216, %v152
      %v224 = vmul.f32 %v216, %v153
      %v225 = vmul.f32 %v216, %v154
      %v226 = vmul.f32 %v216, %v155
      %v227 = vmul.f32 %v216, %v156
      %v228 = vmul.f32 %v216, %v157
      %v229 = vmul.f32 %v216, %v158
      %v230 = vmul.f32 %v216, %v159
      %v231 = vmul.f32 %v216, %v160
      %v232 = vmul.f32 %v216, %v161
      %v233 = vmul.f32 %v216, %v162
      %v234 = vmul.f32 %v216, %v163
      %v235 = vmul.f32 %v216, %v164
      %v236 = vmul.f32 %v216, %v165
      %v237 = vmul.f32 %v216, %v166
      %v238 = vmul.f32 %v216, %v167
      %v239 = vmul.f32 %v216, %v168
      %v240 = vmul.f32 %v216, %v169
      %v241 = vmul.f32 %v216, %v170
      %v242 = vmul.f32 %v216, %v171
      %v243 = vmul.f32 %v216, %v172
      %v244 = vmul.f32 %v216, %v173
      %v245 = vmul.f32 %v216, %v174
      %v246 = vmul.f32 %v216, %v175
      %v247 = vmul.f32 %v216, %v176
      %v248 = vmul.f32 %v216, %v177
      %v249 = vmul.f32 %v216, %v178
      %v250 = vmul.f32 %v216, %v179
      %v251 = vmul.f32 %v216, %v180
      %v252 = vmul.f32 %v216, %v181
      %v253 = vmul.f32 %v216, %v182
      %v254 = vmul.f32 %v216, %v183
      %v255 = vmul.f32 %v216, %v184
      %v256 = vmul.f32 %v216, %v185
      %v257 = vmul.f32 %v216, %v186
      %v258 = vmul.f32 %v216, %v187
      %v259 = vmul.f32 %v216, %v188
      %v260 = vmul.f32 %v216, %v189
      %v261 = vmul.f32 %v216, %v190
      %v262 = vmul.f32 %v216, %v191
      %v263 = vmul.f32 %v216, %v192
      %v264 = vmul.f32 %v216, %v193
      %v265 = vmul.f32 %v216, %v194
      %v266 = vmul.f32 %v216, %v195
      %v267 = vmul.f32 %v216, %v196
      %v268 = vmul.f32 %v216, %v197
      %v269 = vmul.f32 %v216, %v198
      %v270 = vmul.f32 %v216, %v199
      %v271 = vmul.f32 %v216, %v200
      %v272 = vmul.f32 %v216, %v201
      %v273 = vmul.f32 %v216, %v202
      %v274 = vmul.f32 %v216, %v203
      %v275 = vmul.f32 %v216, %v204
      %v276 = vmul.f32 %v216, %v205
      %v277 = vmul.f32 %v216, %v206
      %v278 = vmul.f32 %v216, %v207
      %v279 = vmul.f32 %v216, %v208
      %v280 = vmul.f32 %v216, %v209
      %v281 = vmul.f32 %v216, %v210
      %vm282 = vcmask 392192
      %v283 = vsel %vm282, %v218, -inf
      %284 = vmax.xlane.f32.xlu0 %v283
      %v285 = vpop.xlane.xlu0 %284
      %v286 = vsel %vm282, %v219, -inf
      %287 = vmax.xlane.f32.xlu0 %v286
      %v288 = vpop.xlane.xlu0 %287
      %v289 = vsel %vm282, %v220, -inf
      %290 = vmax.xlane.f32.xlu0 %v289
      %v291 = vpop.xlane.xlu0 %290
      %v292 = vsel %vm282, %v221, -inf
      %293 = vmax.xlane.f32.xlu0 %v292
      %v294 = vpop.xlane.xlu0 %293
      %v295 = vsel %vm282, %v222, -inf
      %296 = vmax.xlane.f32.xlu0 %v295
      %v297 = vpop.xlane.xlu0 %296
      %v298 = vsel %vm282, %v223, -inf
      %299 = vmax.xlane.f32.xlu0 %v298
      %v300 = vpop.xlane.xlu0 %299
      %v301 = vsel %vm282, %v224, -inf
      %302 = vmax.xlane.f32.xlu0 %v301
      %v303 = vpop.xlane.xlu0 %302
      %v304 = vsel %vm282, %v225, -inf
      %305 = vmax.xlane.f32.xlu0 %v304
      %v306 = vpop.xlane.xlu0 %305
      %v307 = vsel %vm282, %v226, -inf
      %308 = vmax.xlane.f32.xlu0 %v307
      %v309 = vpop.xlane.xlu0 %308
      %v310 = vsel %vm282, %v227, -inf
      %311 = vmax.xlane.f32.xlu0 %v310
      %v312 = vpop.xlane.xlu0 %311
      %v313 = vsel %vm282, %v228, -inf
      %314 = vmax.xlane.f32.xlu0 %v313
      %v315 = vpop.xlane.xlu0 %314
      %v316 = vsel %vm282, %v229, -inf
      %317 = vmax.xlane.f32.xlu0 %v316
      %v318 = vpop.xlane.xlu0 %317
      %v319 = vsel %vm282, %v230, -inf
      %320 = vmax.xlane.f32.xlu0 %v319
      %v321 = vpop.xlane.xlu0 %320
      %v322 = vsel %vm282, %v231, -inf
      %323 = vmax.xlane.f32.xlu0 %v322
      %v324 = vpop.xlane.xlu0 %323
      %v325 = vsel %vm282, %v232, -inf
      %326 = vmax.xlane.f32.xlu0 %v325
      %v327 = vpop.xlane.xlu0 %326
      %v328 = vsel %vm282, %v233, -inf
      %329 = vmax.xlane.f32.xlu0 %v328
      %v330 = vpop.xlane.xlu0 %329
      %v331 = vsel %vm282, %v234, -inf
      %332 = vmax.xlane.f32.xlu0 %v331
      %v333 = vpop.xlane.xlu0 %332
      %v334 = vsel %vm282, %v235, -inf
      %335 = vmax.xlane.f32.xlu0 %v334
      %v336 = vpop.xlane.xlu0 %335
      %v337 = vsel %vm282, %v236, -inf
      %338 = vmax.xlane.f32.xlu0 %v337
      %v339 = vpop.xlane.xlu0 %338
      %v340 = vsel %vm282, %v237, -inf
      %341 = vmax.xlane.f32.xlu0 %v340
      %v342 = vpop.xlane.xlu0 %341
      %v343 = vsel %vm282, %v238, -inf
      %344 = vmax.xlane.f32.xlu0 %v343
      %v345 = vpop.xlane.xlu0 %344
      %v346 = vsel %vm282, %v239, -inf
      %347 = vmax.xlane.f32.xlu0 %v346
      %v348 = vpop.xlane.xlu0 %347
      %v349 = vsel %vm282, %v240, -inf
      %350 = vmax.xlane.f32.xlu0 %v349
      %v351 = vpop.xlane.xlu0 %350
      %v352 = vsel %vm282, %v241, -inf
      %353 = vmax.xlane.f32.xlu0 %v352
      %v354 = vpop.xlane.xlu0 %353
      %v355 = vsel %vm282, %v242, -inf
      %356 = vmax.xlane.f32.xlu0 %v355
      %v357 = vpop.xlane.xlu0 %356
      %v358 = vsel %vm282, %v243, -inf
      %359 = vmax.xlane.f32.xlu0 %v358
      %v360 = vpop.xlane.xlu0 %359
      %v361 = vsel %vm282, %v244, -inf
      %362 = vmax.xlane.f32.xlu0 %v361
      %v363 = vpop.xlane.xlu0 %362
      %v364 = vsel %vm282, %v245, -inf
      %365 = vmax.xlane.f32.xlu0 %v364
      %v366 = vpop.xlane.xlu0 %365
      %v367 = vsel %vm282, %v246, -inf
      %368 = vmax.xlane.f32.xlu0 %v367
      %v369 = vpop.xlane.xlu0 %368
      %v370 = vsel %vm282, %v247, -inf
      %371 = vmax.xlane.f32.xlu0 %v370
      %v372 = vpop.xlane.xlu0 %371
      %v373 = vsel %vm282, %v248, -inf
      %374 = vmax.xlane.f32.xlu0 %v373
      %v375 = vpop.xlane.xlu0 %374
      %v376 = vsel %vm282, %v249, -inf
      %377 = vmax.xlane.f32.xlu0 %v376
      %v378 = vpop.xlane.xlu0 %377
      %v379 = vsel %vm282, %v250, -inf
      %380 = vmax.xlane.f32.xlu0 %v379
      %v381 = vpop.xlane.xlu0 %380
      %v382 = vsel %vm282, %v251, -inf
      %383 = vmax.xlane.f32.xlu0 %v382
      %v384 = vpop.xlane.xlu0 %383
      %v385 = vsel %vm282, %v252, -inf
      %386 = vmax.xlane.f32.xlu0 %v385
      %v387 = vpop.xlane.xlu0 %386
      %v388 = vsel %vm282, %v253, -inf
      %389 = vmax.xlane.f32.xlu0 %v388
      %v390 = vpop.xlane.xlu0 %389
      %v391 = vsel %vm282, %v254, -inf
      %392 = vmax.xlane.f32.xlu0 %v391
      %v393 = vpop.xlane.xlu0 %392
      %v394 = vsel %vm282, %v255, -inf
      %395 = vmax.xlane.f32.xlu0 %v394
      %v396 = vpop.xlane.xlu0 %395
      %v397 = vsel %vm282, %v256, -inf
      %398 = vmax.xlane.f32.xlu0 %v397
      %v399 = vpop.xlane.xlu0 %398
      %v400 = vsel %vm282, %v257, -inf
      %401 = vmax.xlane.f32.xlu0 %v400
      %v402 = vpop.xlane.xlu0 %401
      %v403 = vsel %vm282, %v258, -inf
      %404 = vmax.xlane.f32.xlu0 %v403
      %v405 = vpop.xlane.xlu0 %404
      %v406 = vsel %vm282, %v259, -inf
      %407 = vmax.xlane.f32.xlu0 %v406
      %v408 = vpop.xlane.xlu0 %407
      %v409 = vsel %vm282, %v260, -inf
      %410 = vmax.xlane.f32.xlu0 %v409
      %v411 = vpop.xlane.xlu0 %410
      %v412 = vsel %vm282, %v261, -inf
      %413 = vmax.xlane.f32.xlu0 %v412
      %v414 = vpop.xlane.xlu0 %413
      %v415 = vsel %vm282, %v262, -inf
      %416 = vmax.xlane.f32.xlu0 %v415
      %v417 = vpop.xlane.xlu0 %416
      %v418 = vsel %vm282, %v263, -inf
      %419 = vmax.xlane.f32.xlu0 %v418
      %v420 = vpop.xlane.xlu0 %419
      %v421 = vsel %vm282, %v264, -inf
      %422 = vmax.xlane.f32.xlu0 %v421
      %v423 = vpop.xlane.xlu0 %422
      %v424 = vsel %vm282, %v265, -inf
      %425 = vmax.xlane.f32.xlu0 %v424
      %v426 = vpop.xlane.xlu0 %425
      %v427 = vsel %vm282, %v266, -inf
      %428 = vmax.xlane.f32.xlu0 %v427
      %v429 = vpop.xlane.xlu0 %428
      %v430 = vsel %vm282, %v267, -inf
      %431 = vmax.xlane.f32.xlu0 %v430
      %v432 = vpop.xlane.xlu0 %431
      %v433 = vsel %vm282, %v268, -inf
      %434 = vmax.xlane.f32.xlu0 %v433
      %v435 = vpop.xlane.xlu0 %434
      %v436 = vsel %vm282, %v269, -inf
      %437 = vmax.xlane.f32.xlu0 %v436
      %v438 = vpop.xlane.xlu0 %437
      %v439 = vsel %vm282, %v270, -inf
      %440 = vmax.xlane.f32.xlu0 %v439
      %v441 = vpop.xlane.xlu0 %440
      %v442 = vsel %vm282, %v271, -inf
      %443 = vmax.xlane.f32.xlu0 %v442
      %v444 = vpop.xlane.xlu0 %443
      %v445 = vsel %vm282, %v272, -inf
      %446 = vmax.xlane.f32.xlu0 %v445
      %v447 = vpop.xlane.xlu0 %446
      %v448 = vsel %vm282, %v273, -inf
      %449 = vmax.xlane.f32.xlu0 %v448
      %v450 = vpop.xlane.xlu0 %449
      %v451 = vsel %vm282, %v274, -inf
      %452 = vmax.xlane.f32.xlu0 %v451
      %v453 = vpop.xlane.xlu0 %452
      %v454 = vsel %vm282, %v275, -inf
      %455 = vmax.xlane.f32.xlu0 %v454
      %v456 = vpop.xlane.xlu0 %455
      %v457 = vsel %vm282, %v276, -inf
      %458 = vmax.xlane.f32.xlu0 %v457
      %v459 = vpop.xlane.xlu0 %458
      %v460 = vsel %vm282, %v277, -inf
      %461 = vmax.xlane.f32.xlu0 %v460
      %v462 = vpop.xlane.xlu0 %461
      %v463 = vsel %vm282, %v278, -inf
      %464 = vmax.xlane.f32.xlu0 %v463
      %v465 = vpop.xlane.xlu0 %464
      %v466 = vsel %vm282, %v279, -inf
      %467 = vmax.xlane.f32.xlu0 %v466
      %v468 = vpop.xlane.xlu0 %467
      %v469 = vsel %vm282, %v280, -inf
      %470 = vmax.xlane.f32.xlu0 %v469
      %v471 = vpop.xlane.xlu0 %470
      %v472 = vsel %vm282, %v281, -inf
      %473 = vmax.xlane.f32.xlu0 %v472
      %v474 = vpop.xlane.xlu0 %473
      %v475 = vsub.f32 %v218, %v285
      %v476 = vsub.f32 %v219, %v288
      %v477 = vsub.f32 %v220, %v291
      %v478 = vsub.f32 %v221, %v294
      %v479 = vsub.f32 %v222, %v297
      %v480 = vsub.f32 %v223, %v300
      %v481 = vsub.f32 %v224, %v303
      %v482 = vsub.f32 %v225, %v306
      %v483 = vsub.f32 %v226, %v309
      %v484 = vsub.f32 %v227, %v312
      %v485 = vsub.f32 %v228, %v315
      %v486 = vsub.f32 %v229, %v318
      %v487 = vsub.f32 %v230, %v321
      %v488 = vsub.f32 %v231, %v324
      %v489 = vsub.f32 %v232, %v327
      %v490 = vsub.f32 %v233, %v330
      %v491 = vsub.f32 %v234, %v333
      %v492 = vsub.f32 %v235, %v336
      %v493 = vsub.f32 %v236, %v339
      %v494 = vsub.f32 %v237, %v342
      %v495 = vsub.f32 %v238, %v345
      %v496 = vsub.f32 %v239, %v348
      %v497 = vsub.f32 %v240, %v351
      %v498 = vsub.f32 %v241, %v354
      %v499 = vsub.f32 %v242, %v357
      %v500 = vsub.f32 %v243, %v360
      %v501 = vsub.f32 %v244, %v363
      %v502 = vsub.f32 %v245, %v366
      %v503 = vsub.f32 %v246, %v369
      %v504 = vsub.f32 %v247, %v372
      %v505 = vsub.f32 %v248, %v375
      %v506 = vsub.f32 %v249, %v378
      %v507 = vsub.f32 %v250, %v381
      %v508 = vsub.f32 %v251, %v384
      %v509 = vsub.f32 %v252, %v387
      %v510 = vsub.f32 %v253, %v390
      %v511 = vsub.f32 %v254, %v393
      %v512 = vsub.f32 %v255, %v396
      %v513 = vsub.f32 %v256, %v399
      %v514 = vsub.f32 %v257, %v402
      %v515 = vsub.f32 %v258, %v405
      %v516 = vsub.f32 %v259, %v408
      %v517 = vsub.f32 %v260, %v411
      %v518 = vsub.f32 %v261, %v414
      %v519 = vsub.f32 %v262, %v417
      %v520 = vsub.f32 %v263, %v420
      %v521 = vsub.f32 %v264, %v423
      %v522 = vsub.f32 %v265, %v426
      %v523 = vsub.f32 %v266, %v429
      %v524 = vsub.f32 %v267, %v432
      %v525 = vsub.f32 %v268, %v435
      %v526 = vsub.f32 %v269, %v438
      %v527 = vsub.f32 %v270, %v441
      %v528 = vsub.f32 %v271, %v444
      %v529 = vsub.f32 %v272, %v447
      %v530 = vsub.f32 %v273, %v450
      %v531 = vsub.f32 %v274, %v453
      %v532 = vsub.f32 %v275, %v456
      %v533 = vsub.f32 %v276, %v459
      %v534 = vsub.f32 %v277, %v462
      %v535 = vsub.f32 %v278, %v465
      %v536 = vsub.f32 %v279, %v468
      %v537 = vsub.f32 %v280, %v471
      %v538 = vsub.f32 %v281, %v474
      %v539 = vmul.f32 %v475, 1.442695
      %v540 = vpow.pop %v539
      %v541 = vmul.f32 %v476, 1.442695
      %v542 = vpow.pop %v541
      %v543 = vmul.f32 %v477, 1.442695
      %v544 = vpow.pop %v543
      %v545 = vmul.f32 %v478, 1.442695
      %v546 = vpow.pop %v545
      %v547 = vmul.f32 %v479, 1.442695
      %v548 = vpow.pop %v547
      %v549 = vmul.f32 %v480, 1.442695
      %v550 = vpow.pop %v549
      %v551 = vmul.f32 %v481, 1.442695
      %v552 = vpow.pop %v551
      %v553 = vmul.f32 %v482, 1.442695
      %v554 = vpow.pop %v553
      %v555 = vmul.f32 %v483, 1.442695
      %v556 = vpow.pop %v555
      %v557 = vmul.f32 %v484, 1.442695
      %v558 = vpow.pop %v557
      %v559 = vmul.f32 %v485, 1.442695
      %v560 = vpow.pop %v559
      %v561 = vmul.f32 %v486, 1.442695
      %v562 = vpow.pop %v561
      %v563 = vmul.f32 %v487, 1.442695
      %v564 = vpow.pop %v563
      %v565 = vmul.f32 %v488, 1.442695
      %v566 = vpow.pop %v565
      %v567 = vmul.f32 %v489, 1.442695
      %v568 = vpow.pop %v567
      %v569 = vmul.f32 %v490, 1.442695
      %v570 = vpow.pop %v569
      %v571 = vmul.f32 %v491, 1.442695
      %v572 = vpow.pop %v571
      %v573 = vmul.f32 %v492, 1.442695
      %v574 = vpow.pop %v573
      %v575 = vmul.f32 %v493, 1.442695
      %v576 = vpow.pop %v575
      %v577 = vmul.f32 %v494, 1.442695
      %v578 = vpow.pop %v577
      %v579 = vmul.f32 %v495, 1.442695
      %v580 = vpow.pop %v579
      %v581 = vmul.f32 %v496, 1.442695
      %v582 = vpow.pop %v581
      %v583 = vmul.f32 %v497, 1.442695
      %v584 = vpow.pop %v583
      %v585 = vmul.f32 %v498, 1.442695
      %v586 = vpow.pop %v585
      %v587 = vmul.f32 %v499, 1.442695
      %v588 = vpow.pop %v587
      %v589 = vmul.f32 %v500, 1.442695
      %v590 = vpow.pop %v589
      %v591 = vmul.f32 %v501, 1.442695
      %v592 = vpow.pop %v591
      %v593 = vmul.f32 %v502, 1.442695
      %v594 = vpow.pop %v593
      %v595 = vmul.f32 %v503, 1.442695
      %v596 = vpow.pop %v595
      %v597 = vmul.f32 %v504, 1.442695
      %v598 = vpow.pop %v597
      %v599 = vmul.f32 %v505, 1.442695
      %v600 = vpow.pop %v599
      %v601 = vmul.f32 %v506, 1.442695
      %v602 = vpow.pop %v601
      %v603 = vmul.f32 %v507, 1.442695
      %v604 = vpow.pop %v603
      %v605 = vmul.f32 %v508, 1.442695
      %v606 = vpow.pop %v605
      %v607 = vmul.f32 %v509, 1.442695
      %v608 = vpow.pop %v607
      %v609 = vmul.f32 %v510, 1.442695
      %v610 = vpow.pop %v609
      %v611 = vmul.f32 %v511, 1.442695
      %v612 = vpow.pop %v611
      %v613 = vmul.f32 %v512, 1.442695
      %v614 = vpow.pop %v613
      %v615 = vmul.f32 %v513, 1.442695
      %v616 = vpow.pop %v615
      %v617 = vmul.f32 %v514, 1.442695
      %v618 = vpow.pop %v617
      %v619 = vmul.f32 %v515, 1.442695
      %v620 = vpow.pop %v619
      %v621 = vmul.f32 %v516, 1.442695
      %v622 = vpow.pop %v621
      %v623 = vmul.f32 %v517, 1.442695
      %v624 = vpow.pop %v623
      %v625 = vmul.f32 %v518, 1.442695
      %v626 = vpow.pop %v625
      %v627 = vmul.f32 %v519, 1.442695
      %v628 = vpow.pop %v627
      %v629 = vmul.f32 %v520, 1.442695
      %v630 = vpow.pop %v629
      %v631 = vmul.f32 %v521, 1.442695
      %v632 = vpow.pop %v631
      %v633 = vmul.f32 %v522, 1.442695
      %v634 = vpow.pop %v633
      %v635 = vmul.f32 %v523, 1.442695
      %v636 = vpow.pop %v635
      %v637 = vmul.f32 %v524, 1.442695
      %v638 = vpow.pop %v637
      %v639 = vmul.f32 %v525, 1.442695
      %v640 = vpow.pop %v639
      %v641 = vmul.f32 %v526, 1.442695
      %v642 = vpow.pop %v641
      %v643 = vmul.f32 %v527, 1.442695
      %v644 = vpow.pop %v643
      %v645 = vmul.f32 %v528, 1.442695
      %v646 = vpow.pop %v645
      %v647 = vmul.f32 %v529, 1.442695
      %v648 = vpow.pop %v647
      %v649 = vmul.f32 %v530, 1.442695
      %v650 = vpow.pop %v649
      %v651 = vmul.f32 %v531, 1.442695
      %v652 = vpow.pop %v651
      %v653 = vmul.f32 %v532, 1.442695
      %v654 = vpow.pop %v653
      %v655 = vmul.f32 %v533, 1.442695
      %v656 = vpow.pop %v655
      %v657 = vmul.f32 %v534, 1.442695
      %v658 = vpow.pop %v657
      %v659 = vmul.f32 %v535, 1.442695
      %v660 = vpow.pop %v659
      %v661 = vmul.f32 %v536, 1.442695
      %v662 = vpow.pop %v661
      %v663 = vmul.f32 %v537, 1.442695
      %v664 = vpow.pop %v663
      %v665 = vmul.f32 %v538, 1.442695
      %v666 = vpow.pop %v665
      %v667 = vsel %vm282, %v540, 0.0
      %668 = vadd.xlane.f32.xlu0 %v667
      %v669 = vpop.xlane.xlu0 %668
      %v670 = vsel %vm282, %v542, 0.0
      %671 = vadd.xlane.f32.xlu0 %v670
      %v672 = vpop.xlane.xlu0 %671
      %v673 = vsel %vm282, %v544, 0.0
      %674 = vadd.xlane.f32.xlu0 %v673
      %v675 = vpop.xlane.xlu0 %674
      %v676 = vsel %vm282, %v546, 0.0
      %677 = vadd.xlane.f32.xlu0 %v676
      %v678 = vpop.xlane.xlu0 %677
      %v679 = vsel %vm282, %v548, 0.0
      %680 = vadd.xlane.f32.xlu0 %v679
      %v681 = vpop.xlane.xlu0 %680
      %v682 = vsel %vm282, %v550, 0.0
      %683 = vadd.xlane.f32.xlu0 %v682
      %v684 = vpop.xlane.xlu0 %683
      %v685 = vsel %vm282, %v552, 0.0
      %686 = vadd.xlane.f32.xlu0 %v685
      %v687 = vpop.xlane.xlu0 %686
      %v688 = vsel %vm282, %v554, 0.0
      %689 = vadd.xlane.f32.xlu0 %v688
      %v690 = vpop.xlane.xlu0 %689
      %v691 = vsel %vm282, %v556, 0.0
      %692 = vadd.xlane.f32.xlu0 %v691
      %v693 = vpop.xlane.xlu0 %692
      %v694 = vsel %vm282, %v558, 0.0
      %695 = vadd.xlane.f32.xlu0 %v694
      %v696 = vpop.xlane.xlu0 %695
      %v697 = vsel %vm282, %v560, 0.0
      %698 = vadd.xlane.f32.xlu0 %v697
      %v699 = vpop.xlane.xlu0 %698
      %v700 = vsel %vm282, %v562, 0.0
      %701 = vadd.xlane.f32.xlu0 %v700
      %v702 = vpop.xlane.xlu0 %701
      %v703 = vsel %vm282, %v564, 0.0
      %704 = vadd.xlane.f32.xlu0 %v703
      %v705 = vpop.xlane.xlu0 %704
      %v706 = vsel %vm282, %v566, 0.0
      %707 = vadd.xlane.f32.xlu0 %v706
      %v708 = vpop.xlane.xlu0 %707
      %v709 = vsel %vm282, %v568, 0.0
      %710 = vadd.xlane.f32.xlu0 %v709
      %v711 = vpop.xlane.xlu0 %710
      %v712 = vsel %vm282, %v570, 0.0
      %713 = vadd.xlane.f32.xlu0 %v712
      %v714 = vpop.xlane.xlu0 %713
      %v715 = vsel %vm282, %v572, 0.0
      %716 = vadd.xlane.f32.xlu0 %v715
      %v717 = vpop.xlane.xlu0 %716
      %v718 = vsel %vm282, %v574, 0.0
      %719 = vadd.xlane.f32.xlu0 %v718
      %v720 = vpop.xlane.xlu0 %719
      %v721 = vsel %vm282, %v576, 0.0
      %722 = vadd.xlane.f32.xlu0 %v721
      %v723 = vpop.xlane.xlu0 %722
      %v724 = vsel %vm282, %v578, 0.0
      %725 = vadd.xlane.f32.xlu0 %v724
      %v726 = vpop.xlane.xlu0 %725
      %v727 = vsel %vm282, %v580, 0.0
      %728 = vadd.xlane.f32.xlu0 %v727
      %v729 = vpop.xlane.xlu0 %728
      %v730 = vsel %vm282, %v582, 0.0
      %731 = vadd.xlane.f32.xlu0 %v730
      %v732 = vpop.xlane.xlu0 %731
      %v733 = vsel %vm282, %v584, 0.0
      %734 = vadd.xlane.f32.xlu0 %v733
      %v735 = vpop.xlane.xlu0 %734
      %v736 = vsel %vm282, %v586, 0.0
      %737 = vadd.xlane.f32.xlu0 %v736
      %v738 = vpop.xlane.xlu0 %737
      %v739 = vsel %vm282, %v588, 0.0
      %740 = vadd.xlane.f32.xlu0 %v739
      %v741 = vpop.xlane.xlu0 %740
      %v742 = vsel %vm282, %v590, 0.0
      %743 = vadd.xlane.f32.xlu0 %v742
      %v744 = vpop.xlane.xlu0 %743
      %v745 = vsel %vm282, %v592, 0.0
      %746 = vadd.xlane.f32.xlu0 %v745
      %v747 = vpop.xlane.xlu0 %746
      %v748 = vsel %vm282, %v594, 0.0
      %749 = vadd.xlane.f32.xlu0 %v748
      %v750 = vpop.xlane.xlu0 %749
      %v751 = vsel %vm282, %v596, 0.0
      %752 = vadd.xlane.f32.xlu0 %v751
      %v753 = vpop.xlane.xlu0 %752
      %v754 = vsel %vm282, %v598, 0.0
      %755 = vadd.xlane.f32.xlu0 %v754
      %v756 = vpop.xlane.xlu0 %755
      %v757 = vsel %vm282, %v600, 0.0
      %758 = vadd.xlane.f32.xlu0 %v757
      %v759 = vpop.xlane.xlu0 %758
      %v760 = vsel %vm282, %v602, 0.0
      %761 = vadd.xlane.f32.xlu0 %v760
      %v762 = vpop.xlane.xlu0 %761
      %v763 = vsel %vm282, %v604, 0.0
      %764 = vadd.xlane.f32.xlu0 %v763
      %v765 = vpop.xlane.xlu0 %764
      %v766 = vsel %vm282, %v606, 0.0
      %767 = vadd.xlane.f32.xlu0 %v766
      %v768 = vpop.xlane.xlu0 %767
      %v769 = vsel %vm282, %v608, 0.0
      %770 = vadd.xlane.f32.xlu0 %v769
      %v771 = vpop.xlane.xlu0 %770
      %v772 = vsel %vm282, %v610, 0.0
      %773 = vadd.xlane.f32.xlu0 %v772
      %v774 = vpop.xlane.xlu0 %773
      %v775 = vsel %vm282, %v612, 0.0
      %776 = vadd.xlane.f32.xlu0 %v775
      %v777 = vpop.xlane.xlu0 %776
      %v778 = vsel %vm282, %v614, 0.0
      %779 = vadd.xlane.f32.xlu0 %v778
      %v780 = vpop.xlane.xlu0 %779
      %v781 = vsel %vm282, %v616, 0.0
      %782 = vadd.xlane.f32.xlu0 %v781
      %v783 = vpop.xlane.xlu0 %782
      %v784 = vsel %vm282, %v618, 0.0
      %785 = vadd.xlane.f32.xlu0 %v784
      %v786 = vpop.xlane.xlu0 %785
      %v787 = vsel %vm282, %v620, 0.0
      %788 = vadd.xlane.f32.xlu0 %v787
      %v789 = vpop.xlane.xlu0 %788
      %v790 = vsel %vm282, %v622, 0.0
      %791 = vadd.xlane.f32.xlu0 %v790
      %v792 = vpop.xlane.xlu0 %791
      %v793 = vsel %vm282, %v624, 0.0
      %794 = vadd.xlane.f32.xlu0 %v793
      %v795 = vpop.xlane.xlu0 %794
      %v796 = vsel %vm282, %v626, 0.0
      %797 = vadd.xlane.f32.xlu0 %v796
      %v798 = vpop.xlane.xlu0 %797
      %v799 = vsel %vm282, %v628, 0.0
      %800 = vadd.xlane.f32.xlu0 %v799
      %v801 = vpop.xlane.xlu0 %800
      %v802 = vsel %vm282, %v630, 0.0
      %803 = vadd.xlane.f32.xlu0 %v802
      %v804 = vpop.xlane.xlu0 %803
      %v805 = vsel %vm282, %v632, 0.0
      %806 = vadd.xlane.f32.xlu0 %v805
      %v807 = vpop.xlane.xlu0 %806
      %v808 = vsel %vm282, %v634, 0.0
      %809 = vadd.xlane.f32.xlu0 %v808
      %v810 = vpop.xlane.xlu0 %809
      %v811 = vsel %vm282, %v636, 0.0
      %812 = vadd.xlane.f32.xlu0 %v811
      %v813 = vpop.xlane.xlu0 %812
      %v814 = vsel %vm282, %v638, 0.0
      %815 = vadd.xlane.f32.xlu0 %v814
      %v816 = vpop.xlane.xlu0 %815
      %v817 = vsel %vm282, %v640, 0.0
      %818 = vadd.xlane.f32.xlu0 %v817
      %v819 = vpop.xlane.xlu0 %818
      %v820 = vsel %vm282, %v642, 0.0
      %821 = vadd.xlane.f32.xlu0 %v820
      %v822 = vpop.xlane.xlu0 %821
      %v823 = vsel %vm282, %v644, 0.0
      %824 = vadd.xlane.f32.xlu0 %v823
      %v825 = vpop.xlane.xlu0 %824
      %v826 = vsel %vm282, %v646, 0.0
      %827 = vadd.xlane.f32.xlu0 %v826
      %v828 = vpop.xlane.xlu0 %827
      %v829 = vsel %vm282, %v648, 0.0
      %830 = vadd.xlane.f32.xlu0 %v829
      %v831 = vpop.xlane.xlu0 %830
      %v832 = vsel %vm282, %v650, 0.0
      %833 = vadd.xlane.f32.xlu0 %v832
      %v834 = vpop.xlane.xlu0 %833
      %v835 = vsel %vm282, %v652, 0.0
      %836 = vadd.xlane.f32.xlu0 %v835
      %v837 = vpop.xlane.xlu0 %836
      %v838 = vsel %vm282, %v654, 0.0
      %839 = vadd.xlane.f32.xlu0 %v838
      %v840 = vpop.xlane.xlu0 %839
      %v841 = vsel %vm282, %v656, 0.0
      %842 = vadd.xlane.f32.xlu0 %v841
      %v843 = vpop.xlane.xlu0 %842
      %v844 = vsel %vm282, %v658, 0.0
      %845 = vadd.xlane.f32.xlu0 %v844
      %v846 = vpop.xlane.xlu0 %845
      %v847 = vsel %vm282, %v660, 0.0
      %848 = vadd.xlane.f32.xlu0 %v847
      %v849 = vpop.xlane.xlu0 %848
      %v850 = vsel %vm282, %v662, 0.0
      %851 = vadd.xlane.f32.xlu0 %v850
      %v852 = vpop.xlane.xlu0 %851
      %v853 = vsel %vm282, %v664, 0.0
      %854 = vadd.xlane.f32.xlu0 %v853
      %v855 = vpop.xlane.xlu0 %854
      %v856 = vsel %vm282, %v666, 0.0
      %857 = vadd.xlane.f32.xlu0 %v856
      %v858 = vpop.xlane.xlu0 %857
      %v859 = vmul.f32 %v147, %v540
      %v860 = vmul.f32 %v148, %v542
      %v861 = vmul.f32 %v149, %v544
      %v862 = vmul.f32 %v150, %v546
      %v863 = vmul.f32 %v151, %v548
      %v864 = vmul.f32 %v152, %v550
      %v865 = vmul.f32 %v153, %v552
      %v866 = vmul.f32 %v154, %v554
      %v867 = vmul.f32 %v155, %v556
      %v868 = vmul.f32 %v156, %v558
      %v869 = vmul.f32 %v157, %v560
      %v870 = vmul.f32 %v158, %v562
      %v871 = vmul.f32 %v159, %v564
      %v872 = vmul.f32 %v160, %v566
      %v873 = vmul.f32 %v161, %v568
      %v874 = vmul.f32 %v162, %v570
      %v875 = vmul.f32 %v163, %v572
      %v876 = vmul.f32 %v164, %v574
      %v877 = vmul.f32 %v165, %v576
      %v878 = vmul.f32 %v166, %v578
      %v879 = vmul.f32 %v167, %v580
      %v880 = vmul.f32 %v168, %v582
      %v881 = vmul.f32 %v169, %v584
      %v882 = vmul.f32 %v170, %v586
      %v883 = vmul.f32 %v171, %v588
      %v884 = vmul.f32 %v172, %v590
      %v885 = vmul.f32 %v173, %v592
      %v886 = vmul.f32 %v174, %v594
      %v887 = vmul.f32 %v175, %v596
      %v888 = vmul.f32 %v176, %v598
      %v889 = vmul.f32 %v177, %v600
      %v890 = vmul.f32 %v178, %v602
      %v891 = vmul.f32 %v179, %v604
      %v892 = vmul.f32 %v180, %v606
      %v893 = vmul.f32 %v181, %v608
      %v894 = vmul.f32 %v182, %v610
      %v895 = vmul.f32 %v183, %v612
      %v896 = vmul.f32 %v184, %v614
      %v897 = vmul.f32 %v185, %v616
      %v898 = vmul.f32 %v186, %v618
      %v899 = vmul.f32 %v187, %v620
      %v900 = vmul.f32 %v188, %v622
      %v901 = vmul.f32 %v189, %v624
      %v902 = vmul.f32 %v190, %v626
      %v903 = vmul.f32 %v191, %v628
      %v904 = vmul.f32 %v192, %v630
      %v905 = vmul.f32 %v193, %v632
      %v906 = vmul.f32 %v194, %v634
      %v907 = vmul.f32 %v195, %v636
      %v908 = vmul.f32 %v196, %v638
      %v909 = vmul.f32 %v197, %v640
      %v910 = vmul.f32 %v198, %v642
      %v911 = vmul.f32 %v199, %v644
      %v912 = vmul.f32 %v200, %v646
      %v913 = vmul.f32 %v201, %v648
      %v914 = vmul.f32 %v202, %v650
      %v915 = vmul.f32 %v203, %v652
      %v916 = vmul.f32 %v204, %v654
      %v917 = vmul.f32 %v205, %v656
      %v918 = vmul.f32 %v206, %v658
      %v919 = vmul.f32 %v207, %v660
      %v920 = vmul.f32 %v208, %v662
      %v921 = vmul.f32 %v209, %v664
      %v922 = vmul.f32 %v210, %v666
      %v923 = vlaneseq
      %v924 = vand.u32 %v923, 127
      %vm925 = vcmp.ge.s32.totalorder %v924, 0
      %vm926 = vcmp.lt.s32.totalorder %v924, 12
      %vm927 = vmand %vm925, %vm926
      %v928 = vsel %vm927, 1, 0
      %vm929 = vcmp.eq.s32.totalorder %v928, 1
      %v930 = vsel %vm929, %v859, 0.0
      %v931 = vsel %vm929, %v860, 0.0
      %v932 = vsel %vm929, %v861, 0.0
      %v933 = vsel %vm929, %v862, 0.0
      %v934 = vsel %vm929, %v863, 0.0
      %v935 = vsel %vm929, %v864, 0.0
      %v936 = vsel %vm929, %v865, 0.0
      %v937 = vsel %vm929, %v866, 0.0
      %v938 = vsel %vm929, %v867, 0.0
      %v939 = vsel %vm929, %v868, 0.0
      %v940 = vsel %vm929, %v869, 0.0
      %v941 = vsel %vm929, %v870, 0.0
      %v942 = vsel %vm929, %v871, 0.0
      %v943 = vsel %vm929, %v872, 0.0
      %v944 = vsel %vm929, %v873, 0.0
      %v945 = vsel %vm929, %v874, 0.0
      %v946 = vsel %vm929, %v875, 0.0
      %v947 = vsel %vm929, %v876, 0.0
      %v948 = vsel %vm929, %v877, 0.0
      %v949 = vsel %vm929, %v878, 0.0
      %v950 = vsel %vm929, %v879, 0.0
      %v951 = vsel %vm929, %v880, 0.0
      %v952 = vsel %vm929, %v881, 0.0
      %v953 = vsel %vm929, %v882, 0.0
      %v954 = vsel %vm929, %v883, 0.0
      %v955 = vsel %vm929, %v884, 0.0
      %v956 = vsel %vm929, %v885, 0.0
      %v957 = vsel %vm929, %v886, 0.0
      %v958 = vsel %vm929, %v887, 0.0
      %v959 = vsel %vm929, %v888, 0.0
      %v960 = vsel %vm929, %v889, 0.0
      %v961 = vsel %vm929, %v890, 0.0
      %v962 = vsel %vm929, %v891, 0.0
      %v963 = vsel %vm929, %v892, 0.0
      %v964 = vsel %vm929, %v893, 0.0
      %v965 = vsel %vm929, %v894, 0.0
      %v966 = vsel %vm929, %v895, 0.0
      %v967 = vsel %vm929, %v896, 0.0
      %v968 = vsel %vm929, %v897, 0.0
      %v969 = vsel %vm929, %v898, 0.0
      %v970 = vsel %vm929, %v899, 0.0
      %v971 = vsel %vm929, %v900, 0.0
      %v972 = vsel %vm929, %v901, 0.0
      %v973 = vsel %vm929, %v902, 0.0
      %v974 = vsel %vm929, %v903, 0.0
      %v975 = vsel %vm929, %v904, 0.0
      %v976 = vsel %vm929, %v905, 0.0
      %v977 = vsel %vm929, %v906, 0.0
      %v978 = vsel %vm929, %v907, 0.0
      %v979 = vsel %vm929, %v908, 0.0
      %v980 = vsel %vm929, %v909, 0.0
      %v981 = vsel %vm929, %v910, 0.0
      %v982 = vsel %vm929, %v911, 0.0
      %v983 = vsel %vm929, %v912, 0.0
      %v984 = vsel %vm929, %v913, 0.0
      %v985 = vsel %vm929, %v914, 0.0
      %v986 = vsel %vm929, %v915, 0.0
      %v987 = vsel %vm929, %v916, 0.0
      %v988 = vsel %vm929, %v917, 0.0
      %v989 = vsel %vm929, %v918, 0.0
      %v990 = vsel %vm929, %v919, 0.0
      %v991 = vsel %vm929, %v920, 0.0
      %v992 = vsel %vm929, %v921, 0.0
      %v993 = vsel %vm929, %v922, 0.0
      %v994 = vsel %vm282, %v930, 0.0
      %995 = vadd.xlane.f32.xlu0 %v994
      %v996 = vpop.xlane.xlu0 %995
      %v997 = vsel %vm282, %v931, 0.0
      %998 = vadd.xlane.f32.xlu0 %v997
      %v999 = vpop.xlane.xlu0 %998
      %v1000 = vsel %vm282, %v932, 0.0
      %1001 = vadd.xlane.f32.xlu0 %v1000
      %v1002 = vpop.xlane.xlu0 %1001
      %v1003 = vsel %vm282, %v933, 0.0
      %1004 = vadd.xlane.f32.xlu0 %v1003
      %v1005 = vpop.xlane.xlu0 %1004
      %v1006 = vsel %vm282, %v934, 0.0
      %1007 = vadd.xlane.f32.xlu0 %v1006
      %v1008 = vpop.xlane.xlu0 %1007
      %v1009 = vsel %vm282, %v935, 0.0
      %1010 = vadd.xlane.f32.xlu0 %v1009
      %v1011 = vpop.xlane.xlu0 %1010
      %v1012 = vsel %vm282, %v936, 0.0
      %1013 = vadd.xlane.f32.xlu0 %v1012
      %v1014 = vpop.xlane.xlu0 %1013
      %v1015 = vsel %vm282, %v937, 0.0
      %1016 = vadd.xlane.f32.xlu0 %v1015
      %v1017 = vpop.xlane.xlu0 %1016
      %v1018 = vsel %vm282, %v938, 0.0
      %1019 = vadd.xlane.f32.xlu0 %v1018
      %v1020 = vpop.xlane.xlu0 %1019
      %v1021 = vsel %vm282, %v939, 0.0
      %1022 = vadd.xlane.f32.xlu0 %v1021
      %v1023 = vpop.xlane.xlu0 %1022
      %v1024 = vsel %vm282, %v940, 0.0
      %1025 = vadd.xlane.f32.xlu0 %v1024
      %v1026 = vpop.xlane.xlu0 %1025
      %v1027 = vsel %vm282, %v941, 0.0
      %1028 = vadd.xlane.f32.xlu0 %v1027
      %v1029 = vpop.xlane.xlu0 %1028
      %v1030 = vsel %vm282, %v942, 0.0
      %1031 = vadd.xlane.f32.xlu0 %v1030
      %v1032 = vpop.xlane.xlu0 %1031
      %v1033 = vsel %vm282, %v943, 0.0
      %1034 = vadd.xlane.f32.xlu0 %v1033
      %v1035 = vpop.xlane.xlu0 %1034
      %v1036 = vsel %vm282, %v944, 0.0
      %1037 = vadd.xlane.f32.xlu0 %v1036
      %v1038 = vpop.xlane.xlu0 %1037
      %v1039 = vsel %vm282, %v945, 0.0
      %1040 = vadd.xlane.f32.xlu0 %v1039
      %v1041 = vpop.xlane.xlu0 %1040
      %v1042 = vsel %vm282, %v946, 0.0
      %1043 = vadd.xlane.f32.xlu0 %v1042
      %v1044 = vpop.xlane.xlu0 %1043
      %v1045 = vsel %vm282, %v947, 0.0
      %1046 = vadd.xlane.f32.xlu0 %v1045
      %v1047 = vpop.xlane.xlu0 %1046
      %v1048 = vsel %vm282, %v948, 0.0
      %1049 = vadd.xlane.f32.xlu0 %v1048
      %v1050 = vpop.xlane.xlu0 %1049
      %v1051 = vsel %vm282, %v949, 0.0
      %1052 = vadd.xlane.f32.xlu0 %v1051
      %v1053 = vpop.xlane.xlu0 %1052
      %v1054 = vsel %vm282, %v950, 0.0
      %1055 = vadd.xlane.f32.xlu0 %v1054
      %v1056 = vpop.xlane.xlu0 %1055
      %v1057 = vsel %vm282, %v951, 0.0
      %1058 = vadd.xlane.f32.xlu0 %v1057
      %v1059 = vpop.xlane.xlu0 %1058
      %v1060 = vsel %vm282, %v952, 0.0
      %1061 = vadd.xlane.f32.xlu0 %v1060
      %v1062 = vpop.xlane.xlu0 %1061
      %v1063 = vsel %vm282, %v953, 0.0
      %1064 = vadd.xlane.f32.xlu0 %v1063
      %v1065 = vpop.xlane.xlu0 %1064
      %v1066 = vsel %vm282, %v954, 0.0
      %1067 = vadd.xlane.f32.xlu0 %v1066
      %v1068 = vpop.xlane.xlu0 %1067
      %v1069 = vsel %vm282, %v955, 0.0
      %1070 = vadd.xlane.f32.xlu0 %v1069
      %v1071 = vpop.xlane.xlu0 %1070
      %v1072 = vsel %vm282, %v956, 0.0
      %1073 = vadd.xlane.f32.xlu0 %v1072
      %v1074 = vpop.xlane.xlu0 %1073
      %v1075 = vsel %vm282, %v957, 0.0
      %1076 = vadd.xlane.f32.xlu0 %v1075
      %v1077 = vpop.xlane.xlu0 %1076
      %v1078 = vsel %vm282, %v958, 0.0
      %1079 = vadd.xlane.f32.xlu0 %v1078
      %v1080 = vpop.xlane.xlu0 %1079
      %v1081 = vsel %vm282, %v959, 0.0
      %1082 = vadd.xlane.f32.xlu0 %v1081
      %v1083 = vpop.xlane.xlu0 %1082
      %v1084 = vsel %vm282, %v960, 0.0
      %1085 = vadd.xlane.f32.xlu0 %v1084
      %v1086 = vpop.xlane.xlu0 %1085
      %v1087 = vsel %vm282, %v961, 0.0
      %1088 = vadd.xlane.f32.xlu0 %v1087
      %v1089 = vpop.xlane.xlu0 %1088
      %v1090 = vsel %vm282, %v962, 0.0
      %1091 = vadd.xlane.f32.xlu0 %v1090
      %v1092 = vpop.xlane.xlu0 %1091
      %v1093 = vsel %vm282, %v963, 0.0
      %1094 = vadd.xlane.f32.xlu0 %v1093
      %v1095 = vpop.xlane.xlu0 %1094
      %v1096 = vsel %vm282, %v964, 0.0
      %1097 = vadd.xlane.f32.xlu0 %v1096
      %v1098 = vpop.xlane.xlu0 %1097
      %v1099 = vsel %vm282, %v965, 0.0
      %1100 = vadd.xlane.f32.xlu0 %v1099
      %v1101 = vpop.xlane.xlu0 %1100
      %v1102 = vsel %vm282, %v966, 0.0
      %1103 = vadd.xlane.f32.xlu0 %v1102
      %v1104 = vpop.xlane.xlu0 %1103
      %v1105 = vsel %vm282, %v967, 0.0
      %1106 = vadd.xlane.f32.xlu0 %v1105
      %v1107 = vpop.xlane.xlu0 %1106
      %v1108 = vsel %vm282, %v968, 0.0
      %1109 = vadd.xlane.f32.xlu0 %v1108
      %v1110 = vpop.xlane.xlu0 %1109
      %v1111 = vsel %vm282, %v969, 0.0
      %1112 = vadd.xlane.f32.xlu0 %v1111
      %v1113 = vpop.xlane.xlu0 %1112
      %v1114 = vsel %vm282, %v970, 0.0
      %1115 = vadd.xlane.f32.xlu0 %v1114
      %v1116 = vpop.xlane.xlu0 %1115
      %v1117 = vsel %vm282, %v971, 0.0
      %1118 = vadd.xlane.f32.xlu0 %v1117
      %v1119 = vpop.xlane.xlu0 %1118
      %v1120 = vsel %vm282, %v972, 0.0
      %1121 = vadd.xlane.f32.xlu0 %v1120
      %v1122 = vpop.xlane.xlu0 %1121
      %v1123 = vsel %vm282, %v973, 0.0
      %1124 = vadd.xlane.f32.xlu0 %v1123
      %v1125 = vpop.xlane.xlu0 %1124
      %v1126 = vsel %vm282, %v974, 0.0
      %1127 = vadd.xlane.f32.xlu0 %v1126
      %v1128 = vpop.xlane.xlu0 %1127
      %v1129 = vsel %vm282, %v975, 0.0
      %1130 = vadd.xlane.f32.xlu0 %v1129
      %v1131 = vpop.xlane.xlu0 %1130
      %v1132 = vsel %vm282, %v976, 0.0
      %1133 = vadd.xlane.f32.xlu0 %v1132
      %v1134 = vpop.xlane.xlu0 %1133
      %v1135 = vsel %vm282, %v977, 0.0
      %1136 = vadd.xlane.f32.xlu0 %v1135
      %v1137 = vpop.xlane.xlu0 %1136
      %v1138 = vsel %vm282, %v978, 0.0
      %1139 = vadd.xlane.f32.xlu0 %v1138
      %v1140 = vpop.xlane.xlu0 %1139
      %v1141 = vsel %vm282, %v979, 0.0
      %1142 = vadd.xlane.f32.xlu0 %v1141
      %v1143 = vpop.xlane.xlu0 %1142
      %v1144 = vsel %vm282, %v980, 0.0
      %1145 = vadd.xlane.f32.xlu0 %v1144
      %v1146 = vpop.xlane.xlu0 %1145
      %v1147 = vsel %vm282, %v981, 0.0
      %1148 = vadd.xlane.f32.xlu0 %v1147
      %v1149 = vpop.xlane.xlu0 %1148
      %v1150 = vsel %vm282, %v982, 0.0
      %1151 = vadd.xlane.f32.xlu0 %v1150
      %v1152 = vpop.xlane.xlu0 %1151
      %v1153 = vsel %vm282, %v983, 0.0
      %1154 = vadd.xlane.f32.xlu0 %v1153
      %v1155 = vpop.xlane.xlu0 %1154
      %v1156 = vsel %vm282, %v984, 0.0
      %1157 = vadd.xlane.f32.xlu0 %v1156
      %v1158 = vpop.xlane.xlu0 %1157
      %v1159 = vsel %vm282, %v985, 0.0
      %1160 = vadd.xlane.f32.xlu0 %v1159
      %v1161 = vpop.xlane.xlu0 %1160
      %v1162 = vsel %vm282, %v986, 0.0
      %1163 = vadd.xlane.f32.xlu0 %v1162
      %v1164 = vpop.xlane.xlu0 %1163
      %v1165 = vsel %vm282, %v987, 0.0
      %1166 = vadd.xlane.f32.xlu0 %v1165
      %v1167 = vpop.xlane.xlu0 %1166
      %v1168 = vsel %vm282, %v988, 0.0
      %1169 = vadd.xlane.f32.xlu0 %v1168
      %v1170 = vpop.xlane.xlu0 %1169
      %v1171 = vsel %vm282, %v989, 0.0
      %1172 = vadd.xlane.f32.xlu0 %v1171
      %v1173 = vpop.xlane.xlu0 %1172
      %v1174 = vsel %vm282, %v990, 0.0
      %1175 = vadd.xlane.f32.xlu0 %v1174
      %v1176 = vpop.xlane.xlu0 %1175
      %v1177 = vsel %vm282, %v991, 0.0
      %1178 = vadd.xlane.f32.xlu0 %v1177
      %v1179 = vpop.xlane.xlu0 %1178
      %v1180 = vsel %vm282, %v992, 0.0
      %1181 = vadd.xlane.f32.xlu0 %v1180
      %v1182 = vpop.xlane.xlu0 %1181
      %v1183 = vsel %vm282, %v993, 0.0
      %1184 = vadd.xlane.f32.xlu0 %v1183
      %v1185 = vpop.xlane.xlu0 %1184
      %vm1186 = vcmp.eq.s32.totalorder %v924, 0
      %v1187 = vsel %vm1186, 1, 0
      %vm1188 = vcmp.eq.s32.totalorder %v1187, 1
      %v1189 = vsel %vm1188, %v996, 0.0
      %v1190 = vsel %vm1188, %v999, 0.0
      %v1191 = vsel %vm1188, %v1002, 0.0
      %v1192 = vsel %vm1188, %v1005, 0.0
      %v1193 = vsel %vm1188, %v1008, 0.0
      %v1194 = vsel %vm1188, %v1011, 0.0
      %v1195 = vsel %vm1188, %v1014, 0.0
      %v1196 = vsel %vm1188, %v1017, 0.0
      %v1197 = vsel %vm1188, %v1020, 0.0
      %v1198 = vsel %vm1188, %v1023, 0.0
      %v1199 = vsel %vm1188, %v1026, 0.0
      %v1200 = vsel %vm1188, %v1029, 0.0
      %v1201 = vsel %vm1188, %v1032, 0.0
      %v1202 = vsel %vm1188, %v1035, 0.0
      %v1203 = vsel %vm1188, %v1038, 0.0
      %v1204 = vsel %vm1188, %v1041, 0.0
      %v1205 = vsel %vm1188, %v1044, 0.0
      %v1206 = vsel %vm1188, %v1047, 0.0
      %v1207 = vsel %vm1188, %v1050, 0.0
      %v1208 = vsel %vm1188, %v1053, 0.0
      %v1209 = vsel %vm1188, %v1056, 0.0
      %v1210 = vsel %vm1188, %v1059, 0.0
      %v1211 = vsel %vm1188, %v1062, 0.0
      %v1212 = vsel %vm1188, %v1065, 0.0
      %v1213 = vsel %vm1188, %v1068, 0.0
      %v1214 = vsel %vm1188, %v1071, 0.0
      %v1215 = vsel %vm1188, %v1074, 0.0
      %v1216 = vsel %vm1188, %v1077, 0.0
      %v1217 = vsel %vm1188, %v1080, 0.0
      %v1218 = vsel %vm1188, %v1083, 0.0
      %v1219 = vsel %vm1188, %v1086, 0.0
      %v1220 = vsel %vm1188, %v1089, 0.0
      %v1221 = vsel %vm1188, %v1092, 0.0
      %v1222 = vsel %vm1188, %v1095, 0.0
      %v1223 = vsel %vm1188, %v1098, 0.0
      %v1224 = vsel %vm1188, %v1101, 0.0
      %v1225 = vsel %vm1188, %v1104, 0.0
      %v1226 = vsel %vm1188, %v1107, 0.0
      %v1227 = vsel %vm1188, %v1110, 0.0
      %v1228 = vsel %vm1188, %v1113, 0.0
      %v1229 = vsel %vm1188, %v1116, 0.0
      %v1230 = vsel %vm1188, %v1119, 0.0
      %v1231 = vsel %vm1188, %v1122, 0.0
      %v1232 = vsel %vm1188, %v1125, 0.0
      %v1233 = vsel %vm1188, %v1128, 0.0
      %v1234 = vsel %vm1188, %v1131, 0.0
      %v1235 = vsel %vm1188, %v1134, 0.0
      %v1236 = vsel %vm1188, %v1137, 0.0
      %v1237 = vsel %vm1188, %v1140, 0.0
      %v1238 = vsel %vm1188, %v1143, 0.0
      %v1239 = vsel %vm1188, %v1146, 0.0
      %v1240 = vsel %vm1188, %v1149, 0.0
      %v1241 = vsel %vm1188, %v1152, 0.0
      %v1242 = vsel %vm1188, %v1155, 0.0
      %v1243 = vsel %vm1188, %v1158, 0.0
      %v1244 = vsel %vm1188, %v1161, 0.0
      %v1245 = vsel %vm1188, %v1164, 0.0
      %v1246 = vsel %vm1188, %v1167, 0.0
      %v1247 = vsel %vm1188, %v1170, 0.0
      %v1248 = vsel %vm1188, %v1173, 0.0
      %v1249 = vsel %vm1188, %v1176, 0.0
      %v1250 = vsel %vm1188, %v1179, 0.0
      %v1251 = vsel %vm1188, %v1182, 0.0
      %v1252 = vsel %vm1188, %v1185, 0.0
      %v1253 = vadd.f32 %v1189, 0.0
      %v1254 = vadd.f32 %v1190, 0.0
      %v1255 = vadd.f32 %v1191, 0.0
      %v1256 = vadd.f32 %v1192, 0.0
      %v1257 = vadd.f32 %v1193, 0.0
      %v1258 = vadd.f32 %v1194, 0.0
      %v1259 = vadd.f32 %v1195, 0.0
      %v1260 = vadd.f32 %v1196, 0.0
      %v1261 = vadd.f32 %v1197, 0.0
      %v1262 = vadd.f32 %v1198, 0.0
      %v1263 = vadd.f32 %v1199, 0.0
      %v1264 = vadd.f32 %v1200, 0.0
      %v1265 = vadd.f32 %v1201, 0.0
      %v1266 = vadd.f32 %v1202, 0.0
      %v1267 = vadd.f32 %v1203, 0.0
      %v1268 = vadd.f32 %v1204, 0.0
      %v1269 = vadd.f32 %v1205, 0.0
      %v1270 = vadd.f32 %v1206, 0.0
      %v1271 = vadd.f32 %v1207, 0.0
      %v1272 = vadd.f32 %v1208, 0.0
      %v1273 = vadd.f32 %v1209, 0.0
      %v1274 = vadd.f32 %v1210, 0.0
      %v1275 = vadd.f32 %v1211, 0.0
      %v1276 = vadd.f32 %v1212, 0.0
      %v1277 = vadd.f32 %v1213, 0.0
      %v1278 = vadd.f32 %v1214, 0.0
      %v1279 = vadd.f32 %v1215, 0.0
      %v1280 = vadd.f32 %v1216, 0.0
      %v1281 = vadd.f32 %v1217, 0.0
      %v1282 = vadd.f32 %v1218, 0.0
      %v1283 = vadd.f32 %v1219, 0.0
      %v1284 = vadd.f32 %v1220, 0.0
      %v1285 = vadd.f32 %v1221, 0.0
      %v1286 = vadd.f32 %v1222, 0.0
      %v1287 = vadd.f32 %v1223, 0.0
      %v1288 = vadd.f32 %v1224, 0.0
      %v1289 = vadd.f32 %v1225, 0.0
      %v1290 = vadd.f32 %v1226, 0.0
      %v1291 = vadd.f32 %v1227, 0.0
      %v1292 = vadd.f32 %v1228, 0.0
      %v1293 = vadd.f32 %v1229, 0.0
      %v1294 = vadd.f32 %v1230, 0.0
      %v1295 = vadd.f32 %v1231, 0.0
      %v1296 = vadd.f32 %v1232, 0.0
      %v1297 = vadd.f32 %v1233, 0.0
      %v1298 = vadd.f32 %v1234, 0.0
      %v1299 = vadd.f32 %v1235, 0.0
      %v1300 = vadd.f32 %v1236, 0.0
      %v1301 = vadd.f32 %v1237, 0.0
      %v1302 = vadd.f32 %v1238, 0.0
      %v1303 = vadd.f32 %v1239, 0.0
      %v1304 = vadd.f32 %v1240, 0.0
      %v1305 = vadd.f32 %v1241, 0.0
      %v1306 = vadd.f32 %v1242, 0.0
      %v1307 = vadd.f32 %v1243, 0.0
      %v1308 = vadd.f32 %v1244, 0.0
      %v1309 = vadd.f32 %v1245, 0.0
      %v1310 = vadd.f32 %v1246, 0.0
      %v1311 = vadd.f32 %v1247, 0.0
      %v1312 = vadd.f32 %v1248, 0.0
      %v1313 = vadd.f32 %v1249, 0.0
      %v1314 = vadd.f32 %v1250, 0.0
      %v1315 = vadd.f32 %v1251, 0.0
      %v1316 = vadd.f32 %v1252, 0.0
      %vm1317 = vcmp.ge.s32.totalorder %v924, 12
      %vm1318 = vcmp.lt.s32.totalorder %v924, 24
      %vm1319 = vmand %vm1317, %vm1318
      %v1320 = vsel %vm1319, 1, 0
      %vm1321 = vcmp.eq.s32.totalorder %v1320, 1
      %v1322 = vsel %vm1321, %v859, 0.0
      %v1323 = vsel %vm1321, %v860, 0.0
      %v1324 = vsel %vm1321, %v861, 0.0
      %v1325 = vsel %vm1321, %v862, 0.0
      %v1326 = vsel %vm1321, %v863, 0.0
      %v1327 = vsel %vm1321, %v864, 0.0
      %v1328 = vsel %vm1321, %v865, 0.0
      %v1329 = vsel %vm1321, %v866, 0.0
      %v1330 = vsel %vm1321, %v867, 0.0
      %v1331 = vsel %vm1321, %v868, 0.0
      %v1332 = vsel %vm1321, %v869, 0.0
      %v1333 = vsel %vm1321, %v870, 0.0
      %v1334 = vsel %vm1321, %v871, 0.0
      %v1335 = vsel %vm1321, %v872, 0.0
      %v1336 = vsel %vm1321, %v873, 0.0
      %v1337 = vsel %vm1321, %v874, 0.0
      %v1338 = vsel %vm1321, %v875, 0.0
      %v1339 = vsel %vm1321, %v876, 0.0
      %v1340 = vsel %vm1321, %v877, 0.0
      %v1341 = vsel %vm1321, %v878, 0.0
      %v1342 = vsel %vm1321, %v879, 0.0
      %v1343 = vsel %vm1321, %v880, 0.0
      %v1344 = vsel %vm1321, %v881, 0.0
      %v1345 = vsel %vm1321, %v882, 0.0
      %v1346 = vsel %vm1321, %v883, 0.0
      %v1347 = vsel %vm1321, %v884, 0.0
      %v1348 = vsel %vm1321, %v885, 0.0
      %v1349 = vsel %vm1321, %v886, 0.0
      %v1350 = vsel %vm1321, %v887, 0.0
      %v1351 = vsel %vm1321, %v888, 0.0
      %v1352 = vsel %vm1321, %v889, 0.0
      %v1353 = vsel %vm1321, %v890, 0.0
      %v1354 = vsel %vm1321, %v891, 0.0
      %v1355 = vsel %vm1321, %v892, 0.0
      %v1356 = vsel %vm1321, %v893, 0.0
      %v1357 = vsel %vm1321, %v894, 0.0
      %v1358 = vsel %vm1321, %v895, 0.0
      %v1359 = vsel %vm1321, %v896, 0.0
      %v1360 = vsel %vm1321, %v897, 0.0
      %v1361 = vsel %vm1321, %v898, 0.0
      %v1362 = vsel %vm1321, %v899, 0.0
      %v1363 = vsel %vm1321, %v900, 0.0
      %v1364 = vsel %vm1321, %v901, 0.0
      %v1365 = vsel %vm1321, %v902, 0.0
      %v1366 = vsel %vm1321, %v903, 0.0
      %v1367 = vsel %vm1321, %v904, 0.0
      %v1368 = vsel %vm1321, %v905, 0.0
      %v1369 = vsel %vm1321, %v906, 0.0
      %v1370 = vsel %vm1321, %v907, 0.0
      %v1371 = vsel %vm1321, %v908, 0.0
      %v1372 = vsel %vm1321, %v909, 0.0
      %v1373 = vsel %vm1321, %v910, 0.0
      %v1374 = vsel %vm1321, %v911, 0.0
      %v1375 = vsel %vm1321, %v912, 0.0
      %v1376 = vsel %vm1321, %v913, 0.0
      %v1377 = vsel %vm1321, %v914, 0.0
      %v1378 = vsel %vm1321, %v915, 0.0
      %v1379 = vsel %vm1321, %v916, 0.0
      %v1380 = vsel %vm1321, %v917, 0.0
      %v1381 = vsel %vm1321, %v918, 0.0
      %v1382 = vsel %vm1321, %v919, 0.0
      %v1383 = vsel %vm1321, %v920, 0.0
      %v1384 = vsel %vm1321, %v921, 0.0
      %v1385 = vsel %vm1321, %v922, 0.0
      %v1386 = vsel %vm282, %v1322, 0.0
      %1387 = vadd.xlane.f32.xlu0 %v1386
      %v1388 = vpop.xlane.xlu0 %1387
      %v1389 = vsel %vm282, %v1323, 0.0
      %1390 = vadd.xlane.f32.xlu0 %v1389
      %v1391 = vpop.xlane.xlu0 %1390
      %v1392 = vsel %vm282, %v1324, 0.0
      %1393 = vadd.xlane.f32.xlu0 %v1392
      %v1394 = vpop.xlane.xlu0 %1393
      %v1395 = vsel %vm282, %v1325, 0.0
      %1396 = vadd.xlane.f32.xlu0 %v1395
      %v1397 = vpop.xlane.xlu0 %1396
      %v1398 = vsel %vm282, %v1326, 0.0
      %1399 = vadd.xlane.f32.xlu0 %v1398
      %v1400 = vpop.xlane.xlu0 %1399
      %v1401 = vsel %vm282, %v1327, 0.0
      %1402 = vadd.xlane.f32.xlu0 %v1401
      %v1403 = vpop.xlane.xlu0 %1402
      %v1404 = vsel %vm282, %v1328, 0.0
      %1405 = vadd.xlane.f32.xlu0 %v1404
      %v1406 = vpop.xlane.xlu0 %1405
      %v1407 = vsel %vm282, %v1329, 0.0
      %1408 = vadd.xlane.f32.xlu0 %v1407
      %v1409 = vpop.xlane.xlu0 %1408
      %v1410 = vsel %vm282, %v1330, 0.0
      %1411 = vadd.xlane.f32.xlu0 %v1410
      %v1412 = vpop.xlane.xlu0 %1411
      %v1413 = vsel %vm282, %v1331, 0.0
      %1414 = vadd.xlane.f32.xlu0 %v1413
      %v1415 = vpop.xlane.xlu0 %1414
      %v1416 = vsel %vm282, %v1332, 0.0
      %1417 = vadd.xlane.f32.xlu0 %v1416
      %v1418 = vpop.xlane.xlu0 %1417
      %v1419 = vsel %vm282, %v1333, 0.0
      %1420 = vadd.xlane.f32.xlu0 %v1419
      %v1421 = vpop.xlane.xlu0 %1420
      %v1422 = vsel %vm282, %v1334, 0.0
      %1423 = vadd.xlane.f32.xlu0 %v1422
      %v1424 = vpop.xlane.xlu0 %1423
      %v1425 = vsel %vm282, %v1335, 0.0
      %1426 = vadd.xlane.f32.xlu0 %v1425
      %v1427 = vpop.xlane.xlu0 %1426
      %v1428 = vsel %vm282, %v1336, 0.0
      %1429 = vadd.xlane.f32.xlu0 %v1428
      %v1430 = vpop.xlane.xlu0 %1429
      %v1431 = vsel %vm282, %v1337, 0.0
      %1432 = vadd.xlane.f32.xlu0 %v1431
      %v1433 = vpop.xlane.xlu0 %1432
      %v1434 = vsel %vm282, %v1338, 0.0
      %1435 = vadd.xlane.f32.xlu0 %v1434
      %v1436 = vpop.xlane.xlu0 %1435
      %v1437 = vsel %vm282, %v1339, 0.0
      %1438 = vadd.xlane.f32.xlu0 %v1437
      %v1439 = vpop.xlane.xlu0 %1438
      %v1440 = vsel %vm282, %v1340, 0.0
      %1441 = vadd.xlane.f32.xlu0 %v1440
      %v1442 = vpop.xlane.xlu0 %1441
      %v1443 = vsel %vm282, %v1341, 0.0
      %1444 = vadd.xlane.f32.xlu0 %v1443
      %v1445 = vpop.xlane.xlu0 %1444
      %v1446 = vsel %vm282, %v1342, 0.0
      %1447 = vadd.xlane.f32.xlu0 %v1446
      %v1448 = vpop.xlane.xlu0 %1447
      %v1449 = vsel %vm282, %v1343, 0.0
      %1450 = vadd.xlane.f32.xlu0 %v1449
      %v1451 = vpop.xlane.xlu0 %1450
      %v1452 = vsel %vm282, %v1344, 0.0
      %1453 = vadd.xlane.f32.xlu0 %v1452
      %v1454 = vpop.xlane.xlu0 %1453
      %v1455 = vsel %vm282, %v1345, 0.0
      %1456 = vadd.xlane.f32.xlu0 %v1455
      %v1457 = vpop.xlane.xlu0 %1456
      %v1458 = vsel %vm282, %v1346, 0.0
      %1459 = vadd.xlane.f32.xlu0 %v1458
      %v1460 = vpop.xlane.xlu0 %1459
      %v1461 = vsel %vm282, %v1347, 0.0
      %1462 = vadd.xlane.f32.xlu0 %v1461
      %v1463 = vpop.xlane.xlu0 %1462
      %v1464 = vsel %vm282, %v1348, 0.0
      %1465 = vadd.xlane.f32.xlu0 %v1464
      %v1466 = vpop.xlane.xlu0 %1465
      %v1467 = vsel %vm282, %v1349, 0.0
      %1468 = vadd.xlane.f32.xlu0 %v1467
      %v1469 = vpop.xlane.xlu0 %1468
      %v1470 = vsel %vm282, %v1350, 0.0
      %1471 = vadd.xlane.f32.xlu0 %v1470
      %v1472 = vpop.xlane.xlu0 %1471
      %v1473 = vsel %vm282, %v1351, 0.0
      %1474 = vadd.xlane.f32.xlu0 %v1473
      %v1475 = vpop.xlane.xlu0 %1474
      %v1476 = vsel %vm282, %v1352, 0.0
      %1477 = vadd.xlane.f32.xlu0 %v1476
      %v1478 = vpop.xlane.xlu0 %1477
      %v1479 = vsel %vm282, %v1353, 0.0
      %1480 = vadd.xlane.f32.xlu0 %v1479
      %v1481 = vpop.xlane.xlu0 %1480
      %v1482 = vsel %vm282, %v1354, 0.0
      %1483 = vadd.xlane.f32.xlu0 %v1482
      %v1484 = vpop.xlane.xlu0 %1483
      %v1485 = vsel %vm282, %v1355, 0.0
      %1486 = vadd.xlane.f32.xlu0 %v1485
      %v1487 = vpop.xlane.xlu0 %1486
      %v1488 = vsel %vm282, %v1356, 0.0
      %1489 = vadd.xlane.f32.xlu0 %v1488
      %v1490 = vpop.xlane.xlu0 %1489
      %v1491 = vsel %vm282, %v1357, 0.0
      %1492 = vadd.xlane.f32.xlu0 %v1491
      %v1493 = vpop.xlane.xlu0 %1492
      %v1494 = vsel %vm282, %v1358, 0.0
      %1495 = vadd.xlane.f32.xlu0 %v1494
      %v1496 = vpop.xlane.xlu0 %1495
      %v1497 = vsel %vm282, %v1359, 0.0
      %1498 = vadd.xlane.f32.xlu0 %v1497
      %v1499 = vpop.xlane.xlu0 %1498
      %v1500 = vsel %vm282, %v1360, 0.0
      %1501 = vadd.xlane.f32.xlu0 %v1500
      %v1502 = vpop.xlane.xlu0 %1501
      %v1503 = vsel %vm282, %v1361, 0.0
      %1504 = vadd.xlane.f32.xlu0 %v1503
      %v1505 = vpop.xlane.xlu0 %1504
      %v1506 = vsel %vm282, %v1362, 0.0
      %1507 = vadd.xlane.f32.xlu0 %v1506
      %v1508 = vpop.xlane.xlu0 %1507
      %v1509 = vsel %vm282, %v1363, 0.0
      %1510 = vadd.xlane.f32.xlu0 %v1509
      %v1511 = vpop.xlane.xlu0 %1510
      %v1512 = vsel %vm282, %v1364, 0.0
      %1513 = vadd.xlane.f32.xlu0 %v1512
      %v1514 = vpop.xlane.xlu0 %1513
      %v1515 = vsel %vm282, %v1365, 0.0
      %1516 = vadd.xlane.f32.xlu0 %v1515
      %v1517 = vpop.xlane.xlu0 %1516
      %v1518 = vsel %vm282, %v1366, 0.0
      %1519 = vadd.xlane.f32.xlu0 %v1518
      %v1520 = vpop.xlane.xlu0 %1519
      %v1521 = vsel %vm282, %v1367, 0.0
      %1522 = vadd.xlane.f32.xlu0 %v1521
      %v1523 = vpop.xlane.xlu0 %1522
      %v1524 = vsel %vm282, %v1368, 0.0
      %1525 = vadd.xlane.f32.xlu0 %v1524
      %v1526 = vpop.xlane.xlu0 %1525
      %v1527 = vsel %vm282, %v1369, 0.0
      %1528 = vadd.xlane.f32.xlu0 %v1527
      %v1529 = vpop.xlane.xlu0 %1528
      %v1530 = vsel %vm282, %v1370, 0.0
      %1531 = vadd.xlane.f32.xlu0 %v1530
      %v1532 = vpop.xlane.xlu0 %1531
      %v1533 = vsel %vm282, %v1371, 0.0
      %1534 = vadd.xlane.f32.xlu0 %v1533
      %v1535 = vpop.xlane.xlu0 %1534
      %v1536 = vsel %vm282, %v1372, 0.0
      %1537 = vadd.xlane.f32.xlu0 %v1536
      %v1538 = vpop.xlane.xlu0 %1537
      %v1539 = vsel %vm282, %v1373, 0.0
      %1540 = vadd.xlane.f32.xlu0 %v1539
      %v1541 = vpop.xlane.xlu0 %1540
      %v1542 = vsel %vm282, %v1374, 0.0
      %1543 = vadd.xlane.f32.xlu0 %v1542
      %v1544 = vpop.xlane.xlu0 %1543
      %v1545 = vsel %vm282, %v1375, 0.0
      %1546 = vadd.xlane.f32.xlu0 %v1545
      %v1547 = vpop.xlane.xlu0 %1546
      %v1548 = vsel %vm282, %v1376, 0.0
      %1549 = vadd.xlane.f32.xlu0 %v1548
      %v1550 = vpop.xlane.xlu0 %1549
      %v1551 = vsel %vm282, %v1377, 0.0
      %1552 = vadd.xlane.f32.xlu0 %v1551
      %v1553 = vpop.xlane.xlu0 %1552
      %v1554 = vsel %vm282, %v1378, 0.0
      %1555 = vadd.xlane.f32.xlu0 %v1554
      %v1556 = vpop.xlane.xlu0 %1555
      %v1557 = vsel %vm282, %v1379, 0.0
      %1558 = vadd.xlane.f32.xlu0 %v1557
      %v1559 = vpop.xlane.xlu0 %1558
      %v1560 = vsel %vm282, %v1380, 0.0
      %1561 = vadd.xlane.f32.xlu0 %v1560
      %v1562 = vpop.xlane.xlu0 %1561
      %v1563 = vsel %vm282, %v1381, 0.0
      %1564 = vadd.xlane.f32.xlu0 %v1563
      %v1565 = vpop.xlane.xlu0 %1564
      %v1566 = vsel %vm282, %v1382, 0.0
      %1567 = vadd.xlane.f32.xlu0 %v1566
      %v1568 = vpop.xlane.xlu0 %1567
      %v1569 = vsel %vm282, %v1383, 0.0
      %1570 = vadd.xlane.f32.xlu0 %v1569
      %v1571 = vpop.xlane.xlu0 %1570
      %v1572 = vsel %vm282, %v1384, 0.0
      %1573 = vadd.xlane.f32.xlu0 %v1572
      %v1574 = vpop.xlane.xlu0 %1573
      %v1575 = vsel %vm282, %v1385, 0.0
      %1576 = vadd.xlane.f32.xlu0 %v1575
      %v1577 = vpop.xlane.xlu0 %1576
      %vm1578 = vcmp.eq.s32.totalorder %v924, 1
      %v1579 = vsel %vm1578, 1, 0
      %vm1580 = vcmp.eq.s32.totalorder %v1579, 1
      %v1581 = vsel %vm1580, %v1388, 0.0
      %v1582 = vsel %vm1580, %v1391, 0.0
      %v1583 = vsel %vm1580, %v1394, 0.0
      %v1584 = vsel %vm1580, %v1397, 0.0
      %v1585 = vsel %vm1580, %v1400, 0.0
      %v1586 = vsel %vm1580, %v1403, 0.0
      %v1587 = vsel %vm1580, %v1406, 0.0
      %v1588 = vsel %vm1580, %v1409, 0.0
      %v1589 = vsel %vm1580, %v1412, 0.0
      %v1590 = vsel %vm1580, %v1415, 0.0
      %v1591 = vsel %vm1580, %v1418, 0.0
      %v1592 = vsel %vm1580, %v1421, 0.0
      %v1593 = vsel %vm1580, %v1424, 0.0
      %v1594 = vsel %vm1580, %v1427, 0.0
      %v1595 = vsel %vm1580, %v1430, 0.0
      %v1596 = vsel %vm1580, %v1433, 0.0
      %v1597 = vsel %vm1580, %v1436, 0.0
      %v1598 = vsel %vm1580, %v1439, 0.0
      %v1599 = vsel %vm1580, %v1442, 0.0
      %v1600 = vsel %vm1580, %v1445, 0.0
      %v1601 = vsel %vm1580, %v1448, 0.0
      %v1602 = vsel %vm1580, %v1451, 0.0
      %v1603 = vsel %vm1580, %v1454, 0.0
      %v1604 = vsel %vm1580, %v1457, 0.0
      %v1605 = vsel %vm1580, %v1460, 0.0
      %v1606 = vsel %vm1580, %v1463, 0.0
      %v1607 = vsel %vm1580, %v1466, 0.0
      %v1608 = vsel %vm1580, %v1469, 0.0
      %v1609 = vsel %vm1580, %v1472, 0.0
      %v1610 = vsel %vm1580, %v1475, 0.0
      %v1611 = vsel %vm1580, %v1478, 0.0
      %v1612 = vsel %vm1580, %v1481, 0.0
      %v1613 = vsel %vm1580, %v1484, 0.0
      %v1614 = vsel %vm1580, %v1487, 0.0
      %v1615 = vsel %vm1580, %v1490, 0.0
      %v1616 = vsel %vm1580, %v1493, 0.0
      %v1617 = vsel %vm1580, %v1496, 0.0
      %v1618 = vsel %vm1580, %v1499, 0.0
      %v1619 = vsel %vm1580, %v1502, 0.0
      %v1620 = vsel %vm1580, %v1505, 0.0
      %v1621 = vsel %vm1580, %v1508, 0.0
      %v1622 = vsel %vm1580, %v1511, 0.0
      %v1623 = vsel %vm1580, %v1514, 0.0
      %v1624 = vsel %vm1580, %v1517, 0.0
      %v1625 = vsel %vm1580, %v1520, 0.0
      %v1626 = vsel %vm1580, %v1523, 0.0
      %v1627 = vsel %vm1580, %v1526, 0.0
      %v1628 = vsel %vm1580, %v1529, 0.0
      %v1629 = vsel %vm1580, %v1532, 0.0
      %v1630 = vsel %vm1580, %v1535, 0.0
      %v1631 = vsel %vm1580, %v1538, 0.0
      %v1632 = vsel %vm1580, %v1541, 0.0
      %v1633 = vsel %vm1580, %v1544, 0.0
      %v1634 = vsel %vm1580, %v1547, 0.0
      %v1635 = vsel %vm1580, %v1550, 0.0
      %v1636 = vsel %vm1580, %v1553, 0.0
      %v1637 = vsel %vm1580, %v1556, 0.0
      %v1638 = vsel %vm1580, %v1559, 0.0
      %v1639 = vsel %vm1580, %v1562, 0.0
      %v1640 = vsel %vm1580, %v1565, 0.0
      %v1641 = vsel %vm1580, %v1568, 0.0
      %v1642 = vsel %vm1580, %v1571, 0.0
      %v1643 = vsel %vm1580, %v1574, 0.0
      %v1644 = vsel %vm1580, %v1577, 0.0
      %v1645 = vadd.f32 %v1253, %v1581
      %v1646 = vadd.f32 %v1254, %v1582
      %v1647 = vadd.f32 %v1255, %v1583
      %v1648 = vadd.f32 %v1256, %v1584
      %v1649 = vadd.f32 %v1257, %v1585
      %v1650 = vadd.f32 %v1258, %v1586
      %v1651 = vadd.f32 %v1259, %v1587
      %v1652 = vadd.f32 %v1260, %v1588
      %v1653 = vadd.f32 %v1261, %v1589
      %v1654 = vadd.f32 %v1262, %v1590
      %v1655 = vadd.f32 %v1263, %v1591
      %v1656 = vadd.f32 %v1264, %v1592
      %v1657 = vadd.f32 %v1265, %v1593
      %v1658 = vadd.f32 %v1266, %v1594
      %v1659 = vadd.f32 %v1267, %v1595
      %v1660 = vadd.f32 %v1268, %v1596
      %v1661 = vadd.f32 %v1269, %v1597
      %v1662 = vadd.f32 %v1270, %v1598
      %v1663 = vadd.f32 %v1271, %v1599
      %v1664 = vadd.f32 %v1272, %v1600
      %v1665 = vadd.f32 %v1273, %v1601
      %v1666 = vadd.f32 %v1274, %v1602
      %v1667 = vadd.f32 %v1275, %v1603
      %v1668 = vadd.f32 %v1276, %v1604
      %v1669 = vadd.f32 %v1277, %v1605
      %v1670 = vadd.f32 %v1278, %v1606
      %v1671 = vadd.f32 %v1279, %v1607
      %v1672 = vadd.f32 %v1280, %v1608
      %v1673 = vadd.f32 %v1281, %v1609
      %v1674 = vadd.f32 %v1282, %v1610
      %v1675 = vadd.f32 %v1283, %v1611
      %v1676 = vadd.f32 %v1284, %v1612
      %v1677 = vadd.f32 %v1285, %v1613
      %v1678 = vadd.f32 %v1286, %v1614
      %v1679 = vadd.f32 %v1287, %v1615
      %v1680 = vadd.f32 %v1288, %v1616
      %v1681 = vadd.f32 %v1289, %v1617
      %v1682 = vadd.f32 %v1290, %v1618
      %v1683 = vadd.f32 %v1291, %v1619
      %v1684 = vadd.f32 %v1292, %v1620
      %v1685 = vadd.f32 %v1293, %v1621
      %v1686 = vadd.f32 %v1294, %v1622
      %v1687 = vadd.f32 %v1295, %v1623
      %v1688 = vadd.f32 %v1296, %v1624
      %v1689 = vadd.f32 %v1297, %v1625
      %v1690 = vadd.f32 %v1298, %v1626
      %v1691 = vadd.f32 %v1299, %v1627
      %v1692 = vadd.f32 %v1300, %v1628
      %v1693 = vadd.f32 %v1301, %v1629
      %v1694 = vadd.f32 %v1302, %v1630
      %v1695 = vadd.f32 %v1303, %v1631
      %v1696 = vadd.f32 %v1304, %v1632
      %v1697 = vadd.f32 %v1305, %v1633
      %v1698 = vadd.f32 %v1306, %v1634
      %v1699 = vadd.f32 %v1307, %v1635
      %v1700 = vadd.f32 %v1308, %v1636
      %v1701 = vadd.f32 %v1309, %v1637
      %v1702 = vadd.f32 %v1310, %v1638
      %v1703 = vadd.f32 %v1311, %v1639
      %v1704 = vadd.f32 %v1312, %v1640
      %v1705 = vadd.f32 %v1313, %v1641
      %v1706 = vadd.f32 %v1314, %v1642
      %v1707 = vadd.f32 %v1315, %v1643
      %v1708 = vadd.f32 %v1316, %v1644
      %vm1709 = vcmp.ge.s32.totalorder %v924, 24
      %vm1710 = vcmp.lt.s32.totalorder %v924, 36
      %vm1711 = vmand %vm1709, %vm1710
      %v1712 = vsel %vm1711, 1, 0
      %vm1713 = vcmp.eq.s32.totalorder %v1712, 1
      %v1714 = vsel %vm1713, %v859, 0.0
      %v1715 = vsel %vm1713, %v860, 0.0
      %v1716 = vsel %vm1713, %v861, 0.0
      %v1717 = vsel %vm1713, %v862, 0.0
      %v1718 = vsel %vm1713, %v863, 0.0
      %v1719 = vsel %vm1713, %v864, 0.0
      %v1720 = vsel %vm1713, %v865, 0.0
      %v1721 = vsel %vm1713, %v866, 0.0
      %v1722 = vsel %vm1713, %v867, 0.0
      %v1723 = vsel %vm1713, %v868, 0.0
      %v1724 = vsel %vm1713, %v869, 0.0
      %v1725 = vsel %vm1713, %v870, 0.0
      %v1726 = vsel %vm1713, %v871, 0.0
      %v1727 = vsel %vm1713, %v872, 0.0
      %v1728 = vsel %vm1713, %v873, 0.0
      %v1729 = vsel %vm1713, %v874, 0.0
      %v1730 = vsel %vm1713, %v875, 0.0
      %v1731 = vsel %vm1713, %v876, 0.0
      %v1732 = vsel %vm1713, %v877, 0.0
      %v1733 = vsel %vm1713, %v878, 0.0
      %v1734 = vsel %vm1713, %v879, 0.0
      %v1735 = vsel %vm1713, %v880, 0.0
      %v1736 = vsel %vm1713, %v881, 0.0
      %v1737 = vsel %vm1713, %v882, 0.0
      %v1738 = vsel %vm1713, %v883, 0.0
      %v1739 = vsel %vm1713, %v884, 0.0
      %v1740 = vsel %vm1713, %v885, 0.0
      %v1741 = vsel %vm1713, %v886, 0.0
      %v1742 = vsel %vm1713, %v887, 0.0
      %v1743 = vsel %vm1713, %v888, 0.0
      %v1744 = vsel %vm1713, %v889, 0.0
      %v1745 = vsel %vm1713, %v890, 0.0
      %v1746 = vsel %vm1713, %v891, 0.0
      %v1747 = vsel %vm1713, %v892, 0.0
      %v1748 = vsel %vm1713, %v893, 0.0
      %v1749 = vsel %vm1713, %v894, 0.0
      %v1750 = vsel %vm1713, %v895, 0.0
      %v1751 = vsel %vm1713, %v896, 0.0
      %v1752 = vsel %vm1713, %v897, 0.0
      %v1753 = vsel %vm1713, %v898, 0.0
      %v1754 = vsel %vm1713, %v899, 0.0
      %v1755 = vsel %vm1713, %v900, 0.0
      %v1756 = vsel %vm1713, %v901, 0.0
      %v1757 = vsel %vm1713, %v902, 0.0
      %v1758 = vsel %vm1713, %v903, 0.0
      %v1759 = vsel %vm1713, %v904, 0.0
      %v1760 = vsel %vm1713, %v905, 0.0
      %v1761 = vsel %vm1713, %v906, 0.0
      %v1762 = vsel %vm1713, %v907, 0.0
      %v1763 = vsel %vm1713, %v908, 0.0
      %v1764 = vsel %vm1713, %v909, 0.0
      %v1765 = vsel %vm1713, %v910, 0.0
      %v1766 = vsel %vm1713, %v911, 0.0
      %v1767 = vsel %vm1713, %v912, 0.0
      %v1768 = vsel %vm1713, %v913, 0.0
      %v1769 = vsel %vm1713, %v914, 0.0
      %v1770 = vsel %vm1713, %v915, 0.0
      %v1771 = vsel %vm1713, %v916, 0.0
      %v1772 = vsel %vm1713, %v917, 0.0
      %v1773 = vsel %vm1713, %v918, 0.0
      %v1774 = vsel %vm1713, %v919, 0.0
      %v1775 = vsel %vm1713, %v920, 0.0
      %v1776 = vsel %vm1713, %v921, 0.0
      %v1777 = vsel %vm1713, %v922, 0.0
      %v1778 = vsel %vm282, %v1714, 0.0
      %1779 = vadd.xlane.f32.xlu0 %v1778
      %v1780 = vpop.xlane.xlu0 %1779
      %v1781 = vsel %vm282, %v1715, 0.0
      %1782 = vadd.xlane.f32.xlu0 %v1781
      %v1783 = vpop.xlane.xlu0 %1782
      %v1784 = vsel %vm282, %v1716, 0.0
      %1785 = vadd.xlane.f32.xlu0 %v1784
      %v1786 = vpop.xlane.xlu0 %1785
      %v1787 = vsel %vm282, %v1717, 0.0
      %1788 = vadd.xlane.f32.xlu0 %v1787
      %v1789 = vpop.xlane.xlu0 %1788
      %v1790 = vsel %vm282, %v1718, 0.0
      %1791 = vadd.xlane.f32.xlu0 %v1790
      %v1792 = vpop.xlane.xlu0 %1791
      %v1793 = vsel %vm282, %v1719, 0.0
      %1794 = vadd.xlane.f32.xlu0 %v1793
      %v1795 = vpop.xlane.xlu0 %1794
      %v1796 = vsel %vm282, %v1720, 0.0
      %1797 = vadd.xlane.f32.xlu0 %v1796
      %v1798 = vpop.xlane.xlu0 %1797
      %v1799 = vsel %vm282, %v1721, 0.0
      %1800 = vadd.xlane.f32.xlu0 %v1799
      %v1801 = vpop.xlane.xlu0 %1800
      %v1802 = vsel %vm282, %v1722, 0.0
      %1803 = vadd.xlane.f32.xlu0 %v1802
      %v1804 = vpop.xlane.xlu0 %1803
      %v1805 = vsel %vm282, %v1723, 0.0
      %1806 = vadd.xlane.f32.xlu0 %v1805
      %v1807 = vpop.xlane.xlu0 %1806
      %v1808 = vsel %vm282, %v1724, 0.0
      %1809 = vadd.xlane.f32.xlu0 %v1808
      %v1810 = vpop.xlane.xlu0 %1809
      %v1811 = vsel %vm282, %v1725, 0.0
      %1812 = vadd.xlane.f32.xlu0 %v1811
      %v1813 = vpop.xlane.xlu0 %1812
      %v1814 = vsel %vm282, %v1726, 0.0
      %1815 = vadd.xlane.f32.xlu0 %v1814
      %v1816 = vpop.xlane.xlu0 %1815
      %v1817 = vsel %vm282, %v1727, 0.0
      %1818 = vadd.xlane.f32.xlu0 %v1817
      %v1819 = vpop.xlane.xlu0 %1818
      %v1820 = vsel %vm282, %v1728, 0.0
      %1821 = vadd.xlane.f32.xlu0 %v1820
      %v1822 = vpop.xlane.xlu0 %1821
      %v1823 = vsel %vm282, %v1729, 0.0
      %1824 = vadd.xlane.f32.xlu0 %v1823
      %v1825 = vpop.xlane.xlu0 %1824
      %v1826 = vsel %vm282, %v1730, 0.0
      %1827 = vadd.xlane.f32.xlu0 %v1826
      %v1828 = vpop.xlane.xlu0 %1827
      %v1829 = vsel %vm282, %v1731, 0.0
      %1830 = vadd.xlane.f32.xlu0 %v1829
      %v1831 = vpop.xlane.xlu0 %1830
      %v1832 = vsel %vm282, %v1732, 0.0
      %1833 = vadd.xlane.f32.xlu0 %v1832
      %v1834 = vpop.xlane.xlu0 %1833
      %v1835 = vsel %vm282, %v1733, 0.0
      %1836 = vadd.xlane.f32.xlu0 %v1835
      %v1837 = vpop.xlane.xlu0 %1836
      %v1838 = vsel %vm282, %v1734, 0.0
      %1839 = vadd.xlane.f32.xlu0 %v1838
      %v1840 = vpop.xlane.xlu0 %1839
      %v1841 = vsel %vm282, %v1735, 0.0
      %1842 = vadd.xlane.f32.xlu0 %v1841
      %v1843 = vpop.xlane.xlu0 %1842
      %v1844 = vsel %vm282, %v1736, 0.0
      %1845 = vadd.xlane.f32.xlu0 %v1844
      %v1846 = vpop.xlane.xlu0 %1845
      %v1847 = vsel %vm282, %v1737, 0.0
      %1848 = vadd.xlane.f32.xlu0 %v1847
      %v1849 = vpop.xlane.xlu0 %1848
      %v1850 = vsel %vm282, %v1738, 0.0
      %1851 = vadd.xlane.f32.xlu0 %v1850
      %v1852 = vpop.xlane.xlu0 %1851
      %v1853 = vsel %vm282, %v1739, 0.0
      %1854 = vadd.xlane.f32.xlu0 %v1853
      %v1855 = vpop.xlane.xlu0 %1854
      %v1856 = vsel %vm282, %v1740, 0.0
      %1857 = vadd.xlane.f32.xlu0 %v1856
      %v1858 = vpop.xlane.xlu0 %1857
      %v1859 = vsel %vm282, %v1741, 0.0
      %1860 = vadd.xlane.f32.xlu0 %v1859
      %v1861 = vpop.xlane.xlu0 %1860
      %v1862 = vsel %vm282, %v1742, 0.0
      %1863 = vadd.xlane.f32.xlu0 %v1862
      %v1864 = vpop.xlane.xlu0 %1863
      %v1865 = vsel %vm282, %v1743, 0.0
      %1866 = vadd.xlane.f32.xlu0 %v1865
      %v1867 = vpop.xlane.xlu0 %1866
      %v1868 = vsel %vm282, %v1744, 0.0
      %1869 = vadd.xlane.f32.xlu0 %v1868
      %v1870 = vpop.xlane.xlu0 %1869
      %v1871 = vsel %vm282, %v1745, 0.0
      %1872 = vadd.xlane.f32.xlu0 %v1871
      %v1873 = vpop.xlane.xlu0 %1872
      %v1874 = vsel %vm282, %v1746, 0.0
      %1875 = vadd.xlane.f32.xlu0 %v1874
      %v1876 = vpop.xlane.xlu0 %1875
      %v1877 = vsel %vm282, %v1747, 0.0
      %1878 = vadd.xlane.f32.xlu0 %v1877
      %v1879 = vpop.xlane.xlu0 %1878
      %v1880 = vsel %vm282, %v1748, 0.0
      %1881 = vadd.xlane.f32.xlu0 %v1880
      %v1882 = vpop.xlane.xlu0 %1881
      %v1883 = vsel %vm282, %v1749, 0.0
      %1884 = vadd.xlane.f32.xlu0 %v1883
      %v1885 = vpop.xlane.xlu0 %1884
      %v1886 = vsel %vm282, %v1750, 0.0
      %1887 = vadd.xlane.f32.xlu0 %v1886
      %v1888 = vpop.xlane.xlu0 %1887
      %v1889 = vsel %vm282, %v1751, 0.0
      %1890 = vadd.xlane.f32.xlu0 %v1889
      %v1891 = vpop.xlane.xlu0 %1890
      %v1892 = vsel %vm282, %v1752, 0.0
      %1893 = vadd.xlane.f32.xlu0 %v1892
      %v1894 = vpop.xlane.xlu0 %1893
      %v1895 = vsel %vm282, %v1753, 0.0
      %1896 = vadd.xlane.f32.xlu0 %v1895
      %v1897 = vpop.xlane.xlu0 %1896
      %v1898 = vsel %vm282, %v1754, 0.0
      %1899 = vadd.xlane.f32.xlu0 %v1898
      %v1900 = vpop.xlane.xlu0 %1899
      %v1901 = vsel %vm282, %v1755, 0.0
      %1902 = vadd.xlane.f32.xlu0 %v1901
      %v1903 = vpop.xlane.xlu0 %1902
      %v1904 = vsel %vm282, %v1756, 0.0
      %1905 = vadd.xlane.f32.xlu0 %v1904
      %v1906 = vpop.xlane.xlu0 %1905
      %v1907 = vsel %vm282, %v1757, 0.0
      %1908 = vadd.xlane.f32.xlu0 %v1907
      %v1909 = vpop.xlane.xlu0 %1908
      %v1910 = vsel %vm282, %v1758, 0.0
      %1911 = vadd.xlane.f32.xlu0 %v1910
      %v1912 = vpop.xlane.xlu0 %1911
      %v1913 = vsel %vm282, %v1759, 0.0
      %1914 = vadd.xlane.f32.xlu0 %v1913
      %v1915 = vpop.xlane.xlu0 %1914
      %v1916 = vsel %vm282, %v1760, 0.0
      %1917 = vadd.xlane.f32.xlu0 %v1916
      %v1918 = vpop.xlane.xlu0 %1917
      %v1919 = vsel %vm282, %v1761, 0.0
      %1920 = vadd.xlane.f32.xlu0 %v1919
      %v1921 = vpop.xlane.xlu0 %1920
      %v1922 = vsel %vm282, %v1762, 0.0
      %1923 = vadd.xlane.f32.xlu0 %v1922
      %v1924 = vpop.xlane.xlu0 %1923
      %v1925 = vsel %vm282, %v1763, 0.0
      %1926 = vadd.xlane.f32.xlu0 %v1925
      %v1927 = vpop.xlane.xlu0 %1926
      %v1928 = vsel %vm282, %v1764, 0.0
      %1929 = vadd.xlane.f32.xlu0 %v1928
      %v1930 = vpop.xlane.xlu0 %1929
      %v1931 = vsel %vm282, %v1765, 0.0
      %1932 = vadd.xlane.f32.xlu0 %v1931
      %v1933 = vpop.xlane.xlu0 %1932
      %v1934 = vsel %vm282, %v1766, 0.0
      %1935 = vadd.xlane.f32.xlu0 %v1934
      %v1936 = vpop.xlane.xlu0 %1935
      %v1937 = vsel %vm282, %v1767, 0.0
      %1938 = vadd.xlane.f32.xlu0 %v1937
      %v1939 = vpop.xlane.xlu0 %1938
      %v1940 = vsel %vm282, %v1768, 0.0
      %1941 = vadd.xlane.f32.xlu0 %v1940
      %v1942 = vpop.xlane.xlu0 %1941
      %v1943 = vsel %vm282, %v1769, 0.0
      %1944 = vadd.xlane.f32.xlu0 %v1943
      %v1945 = vpop.xlane.xlu0 %1944
      %v1946 = vsel %vm282, %v1770, 0.0
      %1947 = vadd.xlane.f32.xlu0 %v1946
      %v1948 = vpop.xlane.xlu0 %1947
      %v1949 = vsel %vm282, %v1771, 0.0
      %1950 = vadd.xlane.f32.xlu0 %v1949
      %v1951 = vpop.xlane.xlu0 %1950
      %v1952 = vsel %vm282, %v1772, 0.0
      %1953 = vadd.xlane.f32.xlu0 %v1952
      %v1954 = vpop.xlane.xlu0 %1953
      %v1955 = vsel %vm282, %v1773, 0.0
      %1956 = vadd.xlane.f32.xlu0 %v1955
      %v1957 = vpop.xlane.xlu0 %1956
      %v1958 = vsel %vm282, %v1774, 0.0
      %1959 = vadd.xlane.f32.xlu0 %v1958
      %v1960 = vpop.xlane.xlu0 %1959
      %v1961 = vsel %vm282, %v1775, 0.0
      %1962 = vadd.xlane.f32.xlu0 %v1961
      %v1963 = vpop.xlane.xlu0 %1962
      %v1964 = vsel %vm282, %v1776, 0.0
      %1965 = vadd.xlane.f32.xlu0 %v1964
      %v1966 = vpop.xlane.xlu0 %1965
      %v1967 = vsel %vm282, %v1777, 0.0
      %1968 = vadd.xlane.f32.xlu0 %v1967
      %v1969 = vpop.xlane.xlu0 %1968
      %vm1970 = vcmp.eq.s32.totalorder %v924, 2
      %v1971 = vsel %vm1970, 1, 0
      %vm1972 = vcmp.eq.s32.totalorder %v1971, 1
      %v1973 = vsel %vm1972, %v1780, 0.0
      %v1974 = vsel %vm1972, %v1783, 0.0
      %v1975 = vsel %vm1972, %v1786, 0.0
      %v1976 = vsel %vm1972, %v1789, 0.0
      %v1977 = vsel %vm1972, %v1792, 0.0
      %v1978 = vsel %vm1972, %v1795, 0.0
      %v1979 = vsel %vm1972, %v1798, 0.0
      %v1980 = vsel %vm1972, %v1801, 0.0
      %v1981 = vsel %vm1972, %v1804, 0.0
      %v1982 = vsel %vm1972, %v1807, 0.0
      %v1983 = vsel %vm1972, %v1810, 0.0
      %v1984 = vsel %vm1972, %v1813, 0.0
      %v1985 = vsel %vm1972, %v1816, 0.0
      %v1986 = vsel %vm1972, %v1819, 0.0
      %v1987 = vsel %vm1972, %v1822, 0.0
      %v1988 = vsel %vm1972, %v1825, 0.0
      %v1989 = vsel %vm1972, %v1828, 0.0
      %v1990 = vsel %vm1972, %v1831, 0.0
      %v1991 = vsel %vm1972, %v1834, 0.0
      %v1992 = vsel %vm1972, %v1837, 0.0
      %v1993 = vsel %vm1972, %v1840, 0.0
      %v1994 = vsel %vm1972, %v1843, 0.0
      %v1995 = vsel %vm1972, %v1846, 0.0
      %v1996 = vsel %vm1972, %v1849, 0.0
      %v1997 = vsel %vm1972, %v1852, 0.0
      %v1998 = vsel %vm1972, %v1855, 0.0
      %v1999 = vsel %vm1972, %v1858, 0.0
      %v2000 = vsel %vm1972, %v1861, 0.0
      %v2001 = vsel %vm1972, %v1864, 0.0
      %v2002 = vsel %vm1972, %v1867, 0.0
      %v2003 = vsel %vm1972, %v1870, 0.0
      %v2004 = vsel %vm1972, %v1873, 0.0
      %v2005 = vsel %vm1972, %v1876, 0.0
      %v2006 = vsel %vm1972, %v1879, 0.0
      %v2007 = vsel %vm1972, %v1882, 0.0
      %v2008 = vsel %vm1972, %v1885, 0.0
      %v2009 = vsel %vm1972, %v1888, 0.0
      %v2010 = vsel %vm1972, %v1891, 0.0
      %v2011 = vsel %vm1972, %v1894, 0.0
      %v2012 = vsel %vm1972, %v1897, 0.0
      %v2013 = vsel %vm1972, %v1900, 0.0
      %v2014 = vsel %vm1972, %v1903, 0.0
      %v2015 = vsel %vm1972, %v1906, 0.0
      %v2016 = vsel %vm1972, %v1909, 0.0
      %v2017 = vsel %vm1972, %v1912, 0.0
      %v2018 = vsel %vm1972, %v1915, 0.0
      %v2019 = vsel %vm1972, %v1918, 0.0
      %v2020 = vsel %vm1972, %v1921, 0.0
      %v2021 = vsel %vm1972, %v1924, 0.0
      %v2022 = vsel %vm1972, %v1927, 0.0
      %v2023 = vsel %vm1972, %v1930, 0.0
      %v2024 = vsel %vm1972, %v1933, 0.0
      %v2025 = vsel %vm1972, %v1936, 0.0
      %v2026 = vsel %vm1972, %v1939, 0.0
      %v2027 = vsel %vm1972, %v1942, 0.0
      %v2028 = vsel %vm1972, %v1945, 0.0
      %v2029 = vsel %vm1972, %v1948, 0.0
      %v2030 = vsel %vm1972, %v1951, 0.0
      %v2031 = vsel %vm1972, %v1954, 0.0
      %v2032 = vsel %vm1972, %v1957, 0.0
      %v2033 = vsel %vm1972, %v1960, 0.0
      %v2034 = vsel %vm1972, %v1963, 0.0
      %v2035 = vsel %vm1972, %v1966, 0.0
      %v2036 = vsel %vm1972, %v1969, 0.0
      %v2037 = vadd.f32 %v1645, %v1973
      %v2038 = vadd.f32 %v1646, %v1974
      %v2039 = vadd.f32 %v1647, %v1975
      %v2040 = vadd.f32 %v1648, %v1976
      %v2041 = vadd.f32 %v1649, %v1977
      %v2042 = vadd.f32 %v1650, %v1978
      %v2043 = vadd.f32 %v1651, %v1979
      %v2044 = vadd.f32 %v1652, %v1980
      %v2045 = vadd.f32 %v1653, %v1981
      %v2046 = vadd.f32 %v1654, %v1982
      %v2047 = vadd.f32 %v1655, %v1983
      %v2048 = vadd.f32 %v1656, %v1984
      %v2049 = vadd.f32 %v1657, %v1985
      %v2050 = vadd.f32 %v1658, %v1986
      %v2051 = vadd.f32 %v1659, %v1987
      %v2052 = vadd.f32 %v1660, %v1988
      %v2053 = vadd.f32 %v1661, %v1989
      %v2054 = vadd.f32 %v1662, %v1990
      %v2055 = vadd.f32 %v1663, %v1991
      %v2056 = vadd.f32 %v1664, %v1992
      %v2057 = vadd.f32 %v1665, %v1993
      %v2058 = vadd.f32 %v1666, %v1994
      %v2059 = vadd.f32 %v1667, %v1995
      %v2060 = vadd.f32 %v1668, %v1996
      %v2061 = vadd.f32 %v1669, %v1997
      %v2062 = vadd.f32 %v1670, %v1998
      %v2063 = vadd.f32 %v1671, %v1999
      %v2064 = vadd.f32 %v1672, %v2000
      %v2065 = vadd.f32 %v1673, %v2001
      %v2066 = vadd.f32 %v1674, %v2002
      %v2067 = vadd.f32 %v1675, %v2003
      %v2068 = vadd.f32 %v1676, %v2004
      %v2069 = vadd.f32 %v1677, %v2005
      %v2070 = vadd.f32 %v1678, %v2006
      %v2071 = vadd.f32 %v1679, %v2007
      %v2072 = vadd.f32 %v1680, %v2008
      %v2073 = vadd.f32 %v1681, %v2009
      %v2074 = vadd.f32 %v1682, %v2010
      %v2075 = vadd.f32 %v1683, %v2011
      %v2076 = vadd.f32 %v1684, %v2012
      %v2077 = vadd.f32 %v1685, %v2013
      %v2078 = vadd.f32 %v1686, %v2014
      %v2079 = vadd.f32 %v1687, %v2015
      %v2080 = vadd.f32 %v1688, %v2016
      %v2081 = vadd.f32 %v1689, %v2017
      %v2082 = vadd.f32 %v1690, %v2018
      %v2083 = vadd.f32 %v1691, %v2019
      %v2084 = vadd.f32 %v1692, %v2020
      %v2085 = vadd.f32 %v1693, %v2021
      %v2086 = vadd.f32 %v1694, %v2022
      %v2087 = vadd.f32 %v1695, %v2023
      %v2088 = vadd.f32 %v1696, %v2024
      %v2089 = vadd.f32 %v1697, %v2025
      %v2090 = vadd.f32 %v1698, %v2026
      %v2091 = vadd.f32 %v1699, %v2027
      %v2092 = vadd.f32 %v1700, %v2028
      %v2093 = vadd.f32 %v1701, %v2029
      %v2094 = vadd.f32 %v1702, %v2030
      %v2095 = vadd.f32 %v1703, %v2031
      %v2096 = vadd.f32 %v1704, %v2032
      %v2097 = vadd.f32 %v1705, %v2033
      %v2098 = vadd.f32 %v1706, %v2034
      %v2099 = vadd.f32 %v1707, %v2035
      %v2100 = vadd.f32 %v1708, %v2036
      %vm2101 = vcmp.ge.s32.totalorder %v924, 36
      %vm2102 = vcmp.lt.s32.totalorder %v924, 48
      %vm2103 = vmand %vm2101, %vm2102
      %v2104 = vsel %vm2103, 1, 0
      %vm2105 = vcmp.eq.s32.totalorder %v2104, 1
      %v2106 = vsel %vm2105, %v859, 0.0
      %v2107 = vsel %vm2105, %v860, 0.0
      %v2108 = vsel %vm2105, %v861, 0.0
      %v2109 = vsel %vm2105, %v862, 0.0
      %v2110 = vsel %vm2105, %v863, 0.0
      %v2111 = vsel %vm2105, %v864, 0.0
      %v2112 = vsel %vm2105, %v865, 0.0
      %v2113 = vsel %vm2105, %v866, 0.0
      %v2114 = vsel %vm2105, %v867, 0.0
      %v2115 = vsel %vm2105, %v868, 0.0
      %v2116 = vsel %vm2105, %v869, 0.0
      %v2117 = vsel %vm2105, %v870, 0.0
      %v2118 = vsel %vm2105, %v871, 0.0
      %v2119 = vsel %vm2105, %v872, 0.0
      %v2120 = vsel %vm2105, %v873, 0.0
      %v2121 = vsel %vm2105, %v874, 0.0
      %v2122 = vsel %vm2105, %v875, 0.0
      %v2123 = vsel %vm2105, %v876, 0.0
      %v2124 = vsel %vm2105, %v877, 0.0
      %v2125 = vsel %vm2105, %v878, 0.0
      %v2126 = vsel %vm2105, %v879, 0.0
      %v2127 = vsel %vm2105, %v880, 0.0
      %v2128 = vsel %vm2105, %v881, 0.0
      %v2129 = vsel %vm2105, %v882, 0.0
      %v2130 = vsel %vm2105, %v883, 0.0
      %v2131 = vsel %vm2105, %v884, 0.0
      %v2132 = vsel %vm2105, %v885, 0.0
      %v2133 = vsel %vm2105, %v886, 0.0
      %v2134 = vsel %vm2105, %v887, 0.0
      %v2135 = vsel %vm2105, %v888, 0.0
      %v2136 = vsel %vm2105, %v889, 0.0
      %v2137 = vsel %vm2105, %v890, 0.0
      %v2138 = vsel %vm2105, %v891, 0.0
      %v2139 = vsel %vm2105, %v892, 0.0
      %v2140 = vsel %vm2105, %v893, 0.0
      %v2141 = vsel %vm2105, %v894, 0.0
      %v2142 = vsel %vm2105, %v895, 0.0
      %v2143 = vsel %vm2105, %v896, 0.0
      %v2144 = vsel %vm2105, %v897, 0.0
      %v2145 = vsel %vm2105, %v898, 0.0
      %v2146 = vsel %vm2105, %v899, 0.0
      %v2147 = vsel %vm2105, %v900, 0.0
      %v2148 = vsel %vm2105, %v901, 0.0
      %v2149 = vsel %vm2105, %v902, 0.0
      %v2150 = vsel %vm2105, %v903, 0.0
      %v2151 = vsel %vm2105, %v904, 0.0
      %v2152 = vsel %vm2105, %v905, 0.0
      %v2153 = vsel %vm2105, %v906, 0.0
      %v2154 = vsel %vm2105, %v907, 0.0
      %v2155 = vsel %vm2105, %v908, 0.0
      %v2156 = vsel %vm2105, %v909, 0.0
      %v2157 = vsel %vm2105, %v910, 0.0
      %v2158 = vsel %vm2105, %v911, 0.0
      %v2159 = vsel %vm2105, %v912, 0.0
      %v2160 = vsel %vm2105, %v913, 0.0
      %v2161 = vsel %vm2105, %v914, 0.0
      %v2162 = vsel %vm2105, %v915, 0.0
      %v2163 = vsel %vm2105, %v916, 0.0
      %v2164 = vsel %vm2105, %v917, 0.0
      %v2165 = vsel %vm2105, %v918, 0.0
      %v2166 = vsel %vm2105, %v919, 0.0
      %v2167 = vsel %vm2105, %v920, 0.0
      %v2168 = vsel %vm2105, %v921, 0.0
      %v2169 = vsel %vm2105, %v922, 0.0
      %v2170 = vsel %vm282, %v2106, 0.0
      %2171 = vadd.xlane.f32.xlu0 %v2170
      %v2172 = vpop.xlane.xlu0 %2171
      %v2173 = vsel %vm282, %v2107, 0.0
      %2174 = vadd.xlane.f32.xlu0 %v2173
      %v2175 = vpop.xlane.xlu0 %2174
      %v2176 = vsel %vm282, %v2108, 0.0
      %2177 = vadd.xlane.f32.xlu0 %v2176
      %v2178 = vpop.xlane.xlu0 %2177
      %v2179 = vsel %vm282, %v2109, 0.0
      %2180 = vadd.xlane.f32.xlu0 %v2179
      %v2181 = vpop.xlane.xlu0 %2180
      %v2182 = vsel %vm282, %v2110, 0.0
      %2183 = vadd.xlane.f32.xlu0 %v2182
      %v2184 = vpop.xlane.xlu0 %2183
      %v2185 = vsel %vm282, %v2111, 0.0
      %2186 = vadd.xlane.f32.xlu0 %v2185
      %v2187 = vpop.xlane.xlu0 %2186
      %v2188 = vsel %vm282, %v2112, 0.0
      %2189 = vadd.xlane.f32.xlu0 %v2188
      %v2190 = vpop.xlane.xlu0 %2189
      %v2191 = vsel %vm282, %v2113, 0.0
      %2192 = vadd.xlane.f32.xlu0 %v2191
      %v2193 = vpop.xlane.xlu0 %2192
      %v2194 = vsel %vm282, %v2114, 0.0
      %2195 = vadd.xlane.f32.xlu0 %v2194
      %v2196 = vpop.xlane.xlu0 %2195
      %v2197 = vsel %vm282, %v2115, 0.0
      %2198 = vadd.xlane.f32.xlu0 %v2197
      %v2199 = vpop.xlane.xlu0 %2198
      %v2200 = vsel %vm282, %v2116, 0.0
      %2201 = vadd.xlane.f32.xlu0 %v2200
      %v2202 = vpop.xlane.xlu0 %2201
      %v2203 = vsel %vm282, %v2117, 0.0
      %2204 = vadd.xlane.f32.xlu0 %v2203
      %v2205 = vpop.xlane.xlu0 %2204
      %v2206 = vsel %vm282, %v2118, 0.0
      %2207 = vadd.xlane.f32.xlu0 %v2206
      %v2208 = vpop.xlane.xlu0 %2207
      %v2209 = vsel %vm282, %v2119, 0.0
      %2210 = vadd.xlane.f32.xlu0 %v2209
      %v2211 = vpop.xlane.xlu0 %2210
      %v2212 = vsel %vm282, %v2120, 0.0
      %2213 = vadd.xlane.f32.xlu0 %v2212
      %v2214 = vpop.xlane.xlu0 %2213
      %v2215 = vsel %vm282, %v2121, 0.0
      %2216 = vadd.xlane.f32.xlu0 %v2215
      %v2217 = vpop.xlane.xlu0 %2216
      %v2218 = vsel %vm282, %v2122, 0.0
      %2219 = vadd.xlane.f32.xlu0 %v2218
      %v2220 = vpop.xlane.xlu0 %2219
      %v2221 = vsel %vm282, %v2123, 0.0
      %2222 = vadd.xlane.f32.xlu0 %v2221
      %v2223 = vpop.xlane.xlu0 %2222
      %v2224 = vsel %vm282, %v2124, 0.0
      %2225 = vadd.xlane.f32.xlu0 %v2224
      %v2226 = vpop.xlane.xlu0 %2225
      %v2227 = vsel %vm282, %v2125, 0.0
      %2228 = vadd.xlane.f32.xlu0 %v2227
      %v2229 = vpop.xlane.xlu0 %2228
      %v2230 = vsel %vm282, %v2126, 0.0
      %2231 = vadd.xlane.f32.xlu0 %v2230
      %v2232 = vpop.xlane.xlu0 %2231
      %v2233 = vsel %vm282, %v2127, 0.0
      %2234 = vadd.xlane.f32.xlu0 %v2233
      %v2235 = vpop.xlane.xlu0 %2234
      %v2236 = vsel %vm282, %v2128, 0.0
      %2237 = vadd.xlane.f32.xlu0 %v2236
      %v2238 = vpop.xlane.xlu0 %2237
      %v2239 = vsel %vm282, %v2129, 0.0
      %2240 = vadd.xlane.f32.xlu0 %v2239
      %v2241 = vpop.xlane.xlu0 %2240
      %v2242 = vsel %vm282, %v2130, 0.0
      %2243 = vadd.xlane.f32.xlu0 %v2242
      %v2244 = vpop.xlane.xlu0 %2243
      %v2245 = vsel %vm282, %v2131, 0.0
      %2246 = vadd.xlane.f32.xlu0 %v2245
      %v2247 = vpop.xlane.xlu0 %2246
      %v2248 = vsel %vm282, %v2132, 0.0
      %2249 = vadd.xlane.f32.xlu0 %v2248
      %v2250 = vpop.xlane.xlu0 %2249
      %v2251 = vsel %vm282, %v2133, 0.0
      %2252 = vadd.xlane.f32.xlu0 %v2251
      %v2253 = vpop.xlane.xlu0 %2252
      %v2254 = vsel %vm282, %v2134, 0.0
      %2255 = vadd.xlane.f32.xlu0 %v2254
      %v2256 = vpop.xlane.xlu0 %2255
      %v2257 = vsel %vm282, %v2135, 0.0
      %2258 = vadd.xlane.f32.xlu0 %v2257
      %v2259 = vpop.xlane.xlu0 %2258
      %v2260 = vsel %vm282, %v2136, 0.0
      %2261 = vadd.xlane.f32.xlu0 %v2260
      %v2262 = vpop.xlane.xlu0 %2261
      %v2263 = vsel %vm282, %v2137, 0.0
      %2264 = vadd.xlane.f32.xlu0 %v2263
      %v2265 = vpop.xlane.xlu0 %2264
      %v2266 = vsel %vm282, %v2138, 0.0
      %2267 = vadd.xlane.f32.xlu0 %v2266
      %v2268 = vpop.xlane.xlu0 %2267
      %v2269 = vsel %vm282, %v2139, 0.0
      %2270 = vadd.xlane.f32.xlu0 %v2269
      %v2271 = vpop.xlane.xlu0 %2270
      %v2272 = vsel %vm282, %v2140, 0.0
      %2273 = vadd.xlane.f32.xlu0 %v2272
      %v2274 = vpop.xlane.xlu0 %2273
      %v2275 = vsel %vm282, %v2141, 0.0
      %2276 = vadd.xlane.f32.xlu0 %v2275
      %v2277 = vpop.xlane.xlu0 %2276
      %v2278 = vsel %vm282, %v2142, 0.0
      %2279 = vadd.xlane.f32.xlu0 %v2278
      %v2280 = vpop.xlane.xlu0 %2279
      %v2281 = vsel %vm282, %v2143, 0.0
      %2282 = vadd.xlane.f32.xlu0 %v2281
      %v2283 = vpop.xlane.xlu0 %2282
      %v2284 = vsel %vm282, %v2144, 0.0
      %2285 = vadd.xlane.f32.xlu0 %v2284
      %v2286 = vpop.xlane.xlu0 %2285
      %v2287 = vsel %vm282, %v2145, 0.0
      %2288 = vadd.xlane.f32.xlu0 %v2287
      %v2289 = vpop.xlane.xlu0 %2288
      %v2290 = vsel %vm282, %v2146, 0.0
      %2291 = vadd.xlane.f32.xlu0 %v2290
      %v2292 = vpop.xlane.xlu0 %2291
      %v2293 = vsel %vm282, %v2147, 0.0
      %2294 = vadd.xlane.f32.xlu0 %v2293
      %v2295 = vpop.xlane.xlu0 %2294
      %v2296 = vsel %vm282, %v2148, 0.0
      %2297 = vadd.xlane.f32.xlu0 %v2296
      %v2298 = vpop.xlane.xlu0 %2297
      %v2299 = vsel %vm282, %v2149, 0.0
      %2300 = vadd.xlane.f32.xlu0 %v2299
      %v2301 = vpop.xlane.xlu0 %2300
      %v2302 = vsel %vm282, %v2150, 0.0
      %2303 = vadd.xlane.f32.xlu0 %v2302
      %v2304 = vpop.xlane.xlu0 %2303
      %v2305 = vsel %vm282, %v2151, 0.0
      %2306 = vadd.xlane.f32.xlu0 %v2305
      %v2307 = vpop.xlane.xlu0 %2306
      %v2308 = vsel %vm282, %v2152, 0.0
      %2309 = vadd.xlane.f32.xlu0 %v2308
      %v2310 = vpop.xlane.xlu0 %2309
      %v2311 = vsel %vm282, %v2153, 0.0
      %2312 = vadd.xlane.f32.xlu0 %v2311
      %v2313 = vpop.xlane.xlu0 %2312
      %v2314 = vsel %vm282, %v2154, 0.0
      %2315 = vadd.xlane.f32.xlu0 %v2314
      %v2316 = vpop.xlane.xlu0 %2315
      %v2317 = vsel %vm282, %v2155, 0.0
      %2318 = vadd.xlane.f32.xlu0 %v2317
      %v2319 = vpop.xlane.xlu0 %2318
      %v2320 = vsel %vm282, %v2156, 0.0
      %2321 = vadd.xlane.f32.xlu0 %v2320
      %v2322 = vpop.xlane.xlu0 %2321
      %v2323 = vsel %vm282, %v2157, 0.0
      %2324 = vadd.xlane.f32.xlu0 %v2323
      %v2325 = vpop.xlane.xlu0 %2324
      %v2326 = vsel %vm282, %v2158, 0.0
      %2327 = vadd.xlane.f32.xlu0 %v2326
      %v2328 = vpop.xlane.xlu0 %2327
      %v2329 = vsel %vm282, %v2159, 0.0
      %2330 = vadd.xlane.f32.xlu0 %v2329
      %v2331 = vpop.xlane.xlu0 %2330
      %v2332 = vsel %vm282, %v2160, 0.0
      %2333 = vadd.xlane.f32.xlu0 %v2332
      %v2334 = vpop.xlane.xlu0 %2333
      %v2335 = vsel %vm282, %v2161, 0.0
      %2336 = vadd.xlane.f32.xlu0 %v2335
      %v2337 = vpop.xlane.xlu0 %2336
      %v2338 = vsel %vm282, %v2162, 0.0
      %2339 = vadd.xlane.f32.xlu0 %v2338
      %v2340 = vpop.xlane.xlu0 %2339
      %v2341 = vsel %vm282, %v2163, 0.0
      %2342 = vadd.xlane.f32.xlu0 %v2341
      %v2343 = vpop.xlane.xlu0 %2342
      %v2344 = vsel %vm282, %v2164, 0.0
      %2345 = vadd.xlane.f32.xlu0 %v2344
      %v2346 = vpop.xlane.xlu0 %2345
      %v2347 = vsel %vm282, %v2165, 0.0
      %2348 = vadd.xlane.f32.xlu0 %v2347
      %v2349 = vpop.xlane.xlu0 %2348
      %v2350 = vsel %vm282, %v2166, 0.0
      %2351 = vadd.xlane.f32.xlu0 %v2350
      %v2352 = vpop.xlane.xlu0 %2351
      %v2353 = vsel %vm282, %v2167, 0.0
      %2354 = vadd.xlane.f32.xlu0 %v2353
      %v2355 = vpop.xlane.xlu0 %2354
      %v2356 = vsel %vm282, %v2168, 0.0
      %2357 = vadd.xlane.f32.xlu0 %v2356
      %v2358 = vpop.xlane.xlu0 %2357
      %v2359 = vsel %vm282, %v2169, 0.0
      %2360 = vadd.xlane.f32.xlu0 %v2359
      %v2361 = vpop.xlane.xlu0 %2360
      %vm2362 = vcmp.eq.s32.totalorder %v924, 3
      %v2363 = vsel %vm2362, 1, 0
      %vm2364 = vcmp.eq.s32.totalorder %v2363, 1
      %v2365 = vsel %vm2364, %v2172, 0.0
      %v2366 = vsel %vm2364, %v2175, 0.0
      %v2367 = vsel %vm2364, %v2178, 0.0
      %v2368 = vsel %vm2364, %v2181, 0.0
      %v2369 = vsel %vm2364, %v2184, 0.0
      %v2370 = vsel %vm2364, %v2187, 0.0
      %v2371 = vsel %vm2364, %v2190, 0.0
      %v2372 = vsel %vm2364, %v2193, 0.0
      %v2373 = vsel %vm2364, %v2196, 0.0
      %v2374 = vsel %vm2364, %v2199, 0.0
      %v2375 = vsel %vm2364, %v2202, 0.0
      %v2376 = vsel %vm2364, %v2205, 0.0
      %v2377 = vsel %vm2364, %v2208, 0.0
      %v2378 = vsel %vm2364, %v2211, 0.0
      %v2379 = vsel %vm2364, %v2214, 0.0
      %v2380 = vsel %vm2364, %v2217, 0.0
      %v2381 = vsel %vm2364, %v2220, 0.0
      %v2382 = vsel %vm2364, %v2223, 0.0
      %v2383 = vsel %vm2364, %v2226, 0.0
      %v2384 = vsel %vm2364, %v2229, 0.0
      %v2385 = vsel %vm2364, %v2232, 0.0
      %v2386 = vsel %vm2364, %v2235, 0.0
      %v2387 = vsel %vm2364, %v2238, 0.0
      %v2388 = vsel %vm2364, %v2241, 0.0
      %v2389 = vsel %vm2364, %v2244, 0.0
      %v2390 = vsel %vm2364, %v2247, 0.0
      %v2391 = vsel %vm2364, %v2250, 0.0
      %v2392 = vsel %vm2364, %v2253, 0.0
      %v2393 = vsel %vm2364, %v2256, 0.0
      %v2394 = vsel %vm2364, %v2259, 0.0
      %v2395 = vsel %vm2364, %v2262, 0.0
      %v2396 = vsel %vm2364, %v2265, 0.0
      %v2397 = vsel %vm2364, %v2268, 0.0
      %v2398 = vsel %vm2364, %v2271, 0.0
      %v2399 = vsel %vm2364, %v2274, 0.0
      %v2400 = vsel %vm2364, %v2277, 0.0
      %v2401 = vsel %vm2364, %v2280, 0.0
      %v2402 = vsel %vm2364, %v2283, 0.0
      %v2403 = vsel %vm2364, %v2286, 0.0
      %v2404 = vsel %vm2364, %v2289, 0.0
      %v2405 = vsel %vm2364, %v2292, 0.0
      %v2406 = vsel %vm2364, %v2295, 0.0
      %v2407 = vsel %vm2364, %v2298, 0.0
      %v2408 = vsel %vm2364, %v2301, 0.0
      %v2409 = vsel %vm2364, %v2304, 0.0
      %v2410 = vsel %vm2364, %v2307, 0.0
      %v2411 = vsel %vm2364, %v2310, 0.0
      %v2412 = vsel %vm2364, %v2313, 0.0
      %v2413 = vsel %vm2364, %v2316, 0.0
      %v2414 = vsel %vm2364, %v2319, 0.0
      %v2415 = vsel %vm2364, %v2322, 0.0
      %v2416 = vsel %vm2364, %v2325, 0.0
      %v2417 = vsel %vm2364, %v2328, 0.0
      %v2418 = vsel %vm2364, %v2331, 0.0
      %v2419 = vsel %vm2364, %v2334, 0.0
      %v2420 = vsel %vm2364, %v2337, 0.0
      %v2421 = vsel %vm2364, %v2340, 0.0
      %v2422 = vsel %vm2364, %v2343, 0.0
      %v2423 = vsel %vm2364, %v2346, 0.0
      %v2424 = vsel %vm2364, %v2349, 0.0
      %v2425 = vsel %vm2364, %v2352, 0.0
      %v2426 = vsel %vm2364, %v2355, 0.0
      %v2427 = vsel %vm2364, %v2358, 0.0
      %v2428 = vsel %vm2364, %v2361, 0.0
      %v2429 = vadd.f32 %v2037, %v2365
      %v2430 = vadd.f32 %v2038, %v2366
      %v2431 = vadd.f32 %v2039, %v2367
      %v2432 = vadd.f32 %v2040, %v2368
      %v2433 = vadd.f32 %v2041, %v2369
      %v2434 = vadd.f32 %v2042, %v2370
      %v2435 = vadd.f32 %v2043, %v2371
      %v2436 = vadd.f32 %v2044, %v2372
      %v2437 = vadd.f32 %v2045, %v2373
      %v2438 = vadd.f32 %v2046, %v2374
      %v2439 = vadd.f32 %v2047, %v2375
      %v2440 = vadd.f32 %v2048, %v2376
      %v2441 = vadd.f32 %v2049, %v2377
      %v2442 = vadd.f32 %v2050, %v2378
      %v2443 = vadd.f32 %v2051, %v2379
      %v2444 = vadd.f32 %v2052, %v2380
      %v2445 = vadd.f32 %v2053, %v2381
      %v2446 = vadd.f32 %v2054, %v2382
      %v2447 = vadd.f32 %v2055, %v2383
      %v2448 = vadd.f32 %v2056, %v2384
      %v2449 = vadd.f32 %v2057, %v2385
      %v2450 = vadd.f32 %v2058, %v2386
      %v2451 = vadd.f32 %v2059, %v2387
      %v2452 = vadd.f32 %v2060, %v2388
      %v2453 = vadd.f32 %v2061, %v2389
      %v2454 = vadd.f32 %v2062, %v2390
      %v2455 = vadd.f32 %v2063, %v2391
      %v2456 = vadd.f32 %v2064, %v2392
      %v2457 = vadd.f32 %v2065, %v2393
      %v2458 = vadd.f32 %v2066, %v2394
      %v2459 = vadd.f32 %v2067, %v2395
      %v2460 = vadd.f32 %v2068, %v2396
      %v2461 = vadd.f32 %v2069, %v2397
      %v2462 = vadd.f32 %v2070, %v2398
      %v2463 = vadd.f32 %v2071, %v2399
      %v2464 = vadd.f32 %v2072, %v2400
      %v2465 = vadd.f32 %v2073, %v2401
      %v2466 = vadd.f32 %v2074, %v2402
      %v2467 = vadd.f32 %v2075, %v2403
      %v2468 = vadd.f32 %v2076, %v2404
      %v2469 = vadd.f32 %v2077, %v2405
      %v2470 = vadd.f32 %v2078, %v2406
      %v2471 = vadd.f32 %v2079, %v2407
      %v2472 = vadd.f32 %v2080, %v2408
      %v2473 = vadd.f32 %v2081, %v2409
      %v2474 = vadd.f32 %v2082, %v2410
      %v2475 = vadd.f32 %v2083, %v2411
      %v2476 = vadd.f32 %v2084, %v2412
      %v2477 = vadd.f32 %v2085, %v2413
      %v2478 = vadd.f32 %v2086, %v2414
      %v2479 = vadd.f32 %v2087, %v2415
      %v2480 = vadd.f32 %v2088, %v2416
      %v2481 = vadd.f32 %v2089, %v2417
      %v2482 = vadd.f32 %v2090, %v2418
      %v2483 = vadd.f32 %v2091, %v2419
      %v2484 = vadd.f32 %v2092, %v2420
      %v2485 = vadd.f32 %v2093, %v2421
      %v2486 = vadd.f32 %v2094, %v2422
      %v2487 = vadd.f32 %v2095, %v2423
      %v2488 = vadd.f32 %v2096, %v2424
      %v2489 = vadd.f32 %v2097, %v2425
      %v2490 = vadd.f32 %v2098, %v2426
      %v2491 = vadd.f32 %v2099, %v2427
      %v2492 = vadd.f32 %v2100, %v2428
      %v2493 = vrcp.pop %v669
      %v2494 = vrcp.pop %v672
      %v2495 = vrcp.pop %v675
      %v2496 = vrcp.pop %v678
      %v2497 = vrcp.pop %v681
      %v2498 = vrcp.pop %v684
      %v2499 = vrcp.pop %v687
      %v2500 = vrcp.pop %v690
      %v2501 = vrcp.pop %v693
      %v2502 = vrcp.pop %v696
      %v2503 = vrcp.pop %v699
      %v2504 = vrcp.pop %v702
      %v2505 = vrcp.pop %v705
      %v2506 = vrcp.pop %v708
      %v2507 = vrcp.pop %v711
      %v2508 = vrcp.pop %v714
      %v2509 = vrcp.pop %v717
      %v2510 = vrcp.pop %v720
      %v2511 = vrcp.pop %v723
      %v2512 = vrcp.pop %v726
      %v2513 = vrcp.pop %v729
      %v2514 = vrcp.pop %v732
      %v2515 = vrcp.pop %v735
      %v2516 = vrcp.pop %v738
      %v2517 = vrcp.pop %v741
      %v2518 = vrcp.pop %v744
      %v2519 = vrcp.pop %v747
      %v2520 = vrcp.pop %v750
      %v2521 = vrcp.pop %v753
      %v2522 = vrcp.pop %v756
      %v2523 = vrcp.pop %v759
      %v2524 = vrcp.pop %v762
      %v2525 = vrcp.pop %v765
      %v2526 = vrcp.pop %v768
      %v2527 = vrcp.pop %v771
      %v2528 = vrcp.pop %v774
      %v2529 = vrcp.pop %v777
      %v2530 = vrcp.pop %v780
      %v2531 = vrcp.pop %v783
      %v2532 = vrcp.pop %v786
      %v2533 = vrcp.pop %v789
      %v2534 = vrcp.pop %v792
      %v2535 = vrcp.pop %v795
      %v2536 = vrcp.pop %v798
      %v2537 = vrcp.pop %v801
      %v2538 = vrcp.pop %v804
      %v2539 = vrcp.pop %v807
      %v2540 = vrcp.pop %v810
      %v2541 = vrcp.pop %v813
      %v2542 = vrcp.pop %v816
      %v2543 = vrcp.pop %v819
      %v2544 = vrcp.pop %v822
      %v2545 = vrcp.pop %v825
      %v2546 = vrcp.pop %v828
      %v2547 = vrcp.pop %v831
      %v2548 = vrcp.pop %v834
      %v2549 = vrcp.pop %v837
      %v2550 = vrcp.pop %v840
      %v2551 = vrcp.pop %v843
      %v2552 = vrcp.pop %v846
      %v2553 = vrcp.pop %v849
      %v2554 = vrcp.pop %v852
      %v2555 = vrcp.pop %v855
      %v2556 = vrcp.pop %v858
      %v2557 = vmul.f32 %v2429, %v2493
      %v2558 = vmul.f32 %v2430, %v2494
      %v2559 = vmul.f32 %v2431, %v2495
      %v2560 = vmul.f32 %v2432, %v2496
      %v2561 = vmul.f32 %v2433, %v2497
      %v2562 = vmul.f32 %v2434, %v2498
      %v2563 = vmul.f32 %v2435, %v2499
      %v2564 = vmul.f32 %v2436, %v2500
      %v2565 = vmul.f32 %v2437, %v2501
      %v2566 = vmul.f32 %v2438, %v2502
      %v2567 = vmul.f32 %v2439, %v2503
      %v2568 = vmul.f32 %v2440, %v2504
      %v2569 = vmul.f32 %v2441, %v2505
      %v2570 = vmul.f32 %v2442, %v2506
      %v2571 = vmul.f32 %v2443, %v2507
      %v2572 = vmul.f32 %v2444, %v2508
      %v2573 = vmul.f32 %v2445, %v2509
      %v2574 = vmul.f32 %v2446, %v2510
      %v2575 = vmul.f32 %v2447, %v2511
      %v2576 = vmul.f32 %v2448, %v2512
      %v2577 = vmul.f32 %v2449, %v2513
      %v2578 = vmul.f32 %v2450, %v2514
      %v2579 = vmul.f32 %v2451, %v2515
      %v2580 = vmul.f32 %v2452, %v2516
      %v2581 = vmul.f32 %v2453, %v2517
      %v2582 = vmul.f32 %v2454, %v2518
      %v2583 = vmul.f32 %v2455, %v2519
      %v2584 = vmul.f32 %v2456, %v2520
      %v2585 = vmul.f32 %v2457, %v2521
      %v2586 = vmul.f32 %v2458, %v2522
      %v2587 = vmul.f32 %v2459, %v2523
      %v2588 = vmul.f32 %v2460, %v2524
      %v2589 = vmul.f32 %v2461, %v2525
      %v2590 = vmul.f32 %v2462, %v2526
      %v2591 = vmul.f32 %v2463, %v2527
      %v2592 = vmul.f32 %v2464, %v2528
      %v2593 = vmul.f32 %v2465, %v2529
      %v2594 = vmul.f32 %v2466, %v2530
      %v2595 = vmul.f32 %v2467, %v2531
      %v2596 = vmul.f32 %v2468, %v2532
      %v2597 = vmul.f32 %v2469, %v2533
      %v2598 = vmul.f32 %v2470, %v2534
      %v2599 = vmul.f32 %v2471, %v2535
      %v2600 = vmul.f32 %v2472, %v2536
      %v2601 = vmul.f32 %v2473, %v2537
      %v2602 = vmul.f32 %v2474, %v2538
      %v2603 = vmul.f32 %v2475, %v2539
      %v2604 = vmul.f32 %v2476, %v2540
      %v2605 = vmul.f32 %v2477, %v2541
      %v2606 = vmul.f32 %v2478, %v2542
      %v2607 = vmul.f32 %v2479, %v2543
      %v2608 = vmul.f32 %v2480, %v2544
      %v2609 = vmul.f32 %v2481, %v2545
      %v2610 = vmul.f32 %v2482, %v2546
      %v2611 = vmul.f32 %v2483, %v2547
      %v2612 = vmul.f32 %v2484, %v2548
      %v2613 = vmul.f32 %v2485, %v2549
      %v2614 = vmul.f32 %v2486, %v2550
      %v2615 = vmul.f32 %v2487, %v2551
      %v2616 = vmul.f32 %v2488, %v2552
      %v2617 = vmul.f32 %v2489, %v2553
      %v2618 = vmul.f32 %v2490, %v2554
      %v2619 = vmul.f32 %v2491, %v2555
      %v2620 = vmul.f32 %v2492, %v2556
      %vm2621 = vcmask 31744
      %2622 = vst.msk [vmem:[%s145] sm:$0xff] %vm2621, %v2557
      %2623 = vst.msk [vmem:[%s145 + $0x8] sm:$0xff] %vm2621, %v2558
      %2624 = vst.msk [vmem:[%s145 + $0x10] sm:$0xff] %vm2621, %v2559
      %2625 = vst.msk [vmem:[%s145 + $0x18] sm:$0xff] %vm2621, %v2560
      %2626 = vst.msk [vmem:[%s145 + $0x20] sm:$0xff] %vm2621, %v2561
      %2627 = vst.msk [vmem:[%s145 + $0x28] sm:$0xff] %vm2621, %v2562
      %2628 = vst.msk [vmem:[%s145 + $0x30] sm:$0xff] %vm2621, %v2563
      %2629 = vst.msk [vmem:[%s145 + $0x38] sm:$0xff] %vm2621, %v2564
      %2630 = vst.msk [vmem:[%s145 + $0x40] sm:$0xff] %vm2621, %v2565
      %2631 = vst.msk [vmem:[%s145 + $0x48] sm:$0xff] %vm2621, %v2566
      %2632 = vst.msk [vmem:[%s145 + $0x50] sm:$0xff] %vm2621, %v2567
      %2633 = vst.msk [vmem:[%s145 + $0x58] sm:$0xff] %vm2621, %v2568
      %2634 = vst.msk [vmem:[%s145 + $0x60] sm:$0xff] %vm2621, %v2569
      %2635 = vst.msk [vmem:[%s145 + $0x68] sm:$0xff] %vm2621, %v2570
      %2636 = vst.msk [vmem:[%s145 + $0x70] sm:$0xff] %vm2621, %v2571
      %2637 = vst.msk [vmem:[%s145 + $0x78] sm:$0xff] %vm2621, %v2572
      %2638 = vst.msk [vmem:[%s145 + $0x80] sm:$0xff] %vm2621, %v2573
      %2639 = vst.msk [vmem:[%s145 + $0x88] sm:$0xff] %vm2621, %v2574
      %2640 = vst.msk [vmem:[%s145 + $0x90] sm:$0xff] %vm2621, %v2575
      %2641 = vst.msk [vmem:[%s145 + $0x98] sm:$0xff] %vm2621, %v2576
      %2642 = vst.msk [vmem:[%s145 + $0xa0] sm:$0xff] %vm2621, %v2577
      %2643 = vst.msk [vmem:[%s145 + $0xa8] sm:$0xff] %vm2621, %v2578
      %2644 = vst.msk [vmem:[%s145 + $0xb0] sm:$0xff] %vm2621, %v2579
      %2645 = vst.msk [vmem:[%s145 + $0xb8] sm:$0xff] %vm2621, %v2580
      %2646 = vst.msk [vmem:[%s145 + $0xc0] sm:$0xff] %vm2621, %v2581
      %2647 = vst.msk [vmem:[%s145 + $0xc8] sm:$0xff] %vm2621, %v2582
      %2648 = vst.msk [vmem:[%s145 + $0xd0] sm:$0xff] %vm2621, %v2583
      %2649 = vst.msk [vmem:[%s145 + $0xd8] sm:$0xff] %vm2621, %v2584
      %2650 = vst.msk [vmem:[%s145 + $0xe0] sm:$0xff] %vm2621, %v2585
      %2651 = vst.msk [vmem:[%s145 + $0xe8] sm:$0xff] %vm2621, %v2586
      %2652 = vst.msk [vmem:[%s145 + $0xf0] sm:$0xff] %vm2621, %v2587
      %2653 = vst.msk [vmem:[%s145 + $0xf8] sm:$0xff] %vm2621, %v2588
      %2654 = vst.msk [vmem:[%s145 + $0x100] sm:$0xff] %vm2621, %v2589
      %2655 = vst.msk [vmem:[%s145 + $0x108] sm:$0xff] %vm2621, %v2590
      %2656 = vst.msk [vmem:[%s145 + $0x110] sm:$0xff] %vm2621, %v2591
      %2657 = vst.msk [vmem:[%s145 + $0x118] sm:$0xff] %vm2621, %v2592
      %2658 = vst.msk [vmem:[%s145 + $0x120] sm:$0xff] %vm2621, %v2593
      %2659 = vst.msk [vmem:[%s145 + $0x128] sm:$0xff] %vm2621, %v2594
      %2660 = vst.msk [vmem:[%s145 + $0x130] sm:$0xff] %vm2621, %v2595
      %2661 = vst.msk [vmem:[%s145 + $0x138] sm:$0xff] %vm2621, %v2596
      %2662 = vst.msk [vmem:[%s145 + $0x140] sm:$0xff] %vm2621, %v2597
      %2663 = vst.msk [vmem:[%s145 + $0x148] sm:$0xff] %vm2621, %v2598
      %2664 = vst.msk [vmem:[%s145 + $0x150] sm:$0xff] %vm2621, %v2599
      %2665 = vst.msk [vmem:[%s145 + $0x158] sm:$0xff] %vm2621, %v2600
      %2666 = vst.msk [vmem:[%s145 + $0x160] sm:$0xff] %vm2621, %v2601
      %2667 = vst.msk [vmem:[%s145 + $0x168] sm:$0xff] %vm2621, %v2602
      %2668 = vst.msk [vmem:[%s145 + $0x170] sm:$0xff] %vm2621, %v2603
      %2669 = vst.msk [vmem:[%s145 + $0x178] sm:$0xff] %vm2621, %v2604
      %2670 = vst.msk [vmem:[%s145 + $0x180] sm:$0xff] %vm2621, %v2605
      %2671 = vst.msk [vmem:[%s145 + $0x188] sm:$0xff] %vm2621, %v2606
      %2672 = vst.msk [vmem:[%s145 + $0x190] sm:$0xff] %vm2621, %v2607
      %2673 = vst.msk [vmem:[%s145 + $0x198] sm:$0xff] %vm2621, %v2608
      %2674 = vst.msk [vmem:[%s145 + $0x1a0] sm:$0xff] %vm2621, %v2609
      %2675 = vst.msk [vmem:[%s145 + $0x1a8] sm:$0xff] %vm2621, %v2610
      %2676 = vst.msk [vmem:[%s145 + $0x1b0] sm:$0xff] %vm2621, %v2611
      %2677 = vst.msk [vmem:[%s145 + $0x1b8] sm:$0xff] %vm2621, %v2612
      %2678 = vst.msk [vmem:[%s145 + $0x1c0] sm:$0xff] %vm2621, %v2613
      %2679 = vst.msk [vmem:[%s145 + $0x1c8] sm:$0xff] %vm2621, %v2614
      %2680 = vst.msk [vmem:[%s145 + $0x1d0] sm:$0xff] %vm2621, %v2615
      %2681 = vst.msk [vmem:[%s145 + $0x1d8] sm:$0xff] %vm2621, %v2616
      %2682 = vst.msk [vmem:[%s145 + $0x1e0] sm:$0xff] %vm2621, %v2617
      %2683 = vst.msk [vmem:[%s145 + $0x1e8] sm:$0xff] %vm2621, %v2618
      %2684 = vst.msk [vmem:[%s145 + $0x1f0] sm:$0xff] %vm2621, %v2619
      %2685 = vst.msk [vmem:[%s145 + $0x1f8] sm:$0xff] %vm2621, %v2620
      %s2686 = smul.u32 64, %s13
      %p2687 = scmp.lt.s32.totalorder %s2686, 127
      %s2688 = scalar_select %p2687, %s2686, 127
      %s2689 = smul.addr %s2688, 8
      %s2690 = scalar_lea.vmem %s2, %s2689
      // Predicated region
      $region29: #{tpu_custom_call.1} parent=27 // pred_check
        %p2691 = pneg %p78
      $region30: #{tpu_custom_call.1} parent=27 // pred_check_branch
        %2693 = sbr.rel (%p2691) target = $region32
      $region31: #{tpu_custom_call.1} parent=27 // pred_region
        %s2694 = smul.u32 64, %s13
      $region32: #{tpu_custom_call.1} parent=27 // pred_fallthru
        _
    $region28: #{tpu_custom_call.1} parent=5 // pred_fallthru
      _
    %p2695 = scmp.le.s32.totalorder 2, %s8
    // Predicated region
    $region33: #{tpu_custom_call.1} parent=5 // pred_check
      %p2696 = pneg %p2695
    $region34: #{tpu_custom_call.1} parent=5 // pred_check_branch
      %2698 = sbr.rel (%p2696) target = $region36
    $region35: #{tpu_custom_call.1} parent=5 // pred_region
      %s2699 = ssub.s32 %s8, 2
      // Predicated region
      $region37: #{tpu_custom_call.1} parent=35 // pred_check
        %p2700 = pneg %p84
      $region38: #{tpu_custom_call.1} parent=35 // pred_check_branch
        %2702 = sbr.rel (%p2700) target = $region40
      $region39: #{tpu_custom_call.1} parent=35 // pred_region
        %s2703 = smul.u32 64, %s14
        %p2704 = scmp.lt.s32.totalorder %s2703, 127
        %s2705 = scalar_select %p2704, %s2703, 127
        %s2706 = smul.addr %s2705, 8
        %s2707 = scalar_lea.vmem %s2, %s2706
      $region40: #{tpu_custom_call.1} parent=35 // pred_fallthru
        _
    $region36: #{tpu_custom_call.1} parent=5 // pred_fallthru
      _
  $region6: #{tpu_custom_call.1} parent=0 // loop_footer
    %s12 = sadd.s32 1, %s8
  $region7: #{tpu_custom_call.1} parent=0 // loop_footer_branch
    %7 = sbr.rel target = $region3
  $region8: #{tpu_custom_call.1} parent=0 // loop_exit
    _

</llo_original>
